<compile_context>
chip_gen: v6e
topology: v6e:2x2x1
jax: 0.10.0
libtpu: 0.0.40
codegen_flags: <defaults>
</compile_context>

<pallas_src>
import functools

import numpy as np
import jax
import jax.numpy as jnp
from jax import lax
from jax.experimental import pallas as pl
from jax.experimental.pallas import tpu as pltpu


def mapping_kernel(patches_ref, w1_ref, w2_ref, wab_ref, wf_ref, bias_ref,
                   out_ref):
    B = out_ref.shape[0]

    # One full load of the bias slab; every later bias add is a value slice of
    # registers instead of a separate masked VMEM load.
    bias = bias_ref[...]                                          # (13, 128) f32

    # ---- head conv1 (k=3, s=2, p=1): all 4 output pixels in one MXU dot ----
    # patches rows are position-major (row r = p*B + b, p = oy*2 + ox);
    # w1 is lane-padded so h is lane-dense (4B, 128).
    h = jnp.dot(patches_ref[...], w1_ref[...],
                preferred_element_type=jnp.float32)               # (4B, 128)
    h = h + bias[0:1, :]
    h = jnp.where(h > 0, h, 0.2 * h)                              # LeakyReLU(0.2)
    h_bf = h.astype(jnp.bfloat16)                                 # cast once

    # ---- head conv2 (k=2, s=1, p=0): accumulate 4 per-position dots ----
    # No VMEM scratch / lane scatter: the 2x2 map is consumed directly from
    # the in-register value h, one (B,128)@(128,128) dot per kernel tap.
    y = jnp.dot(h_bf[0:B, :], w2_ref[0],
                preferred_element_type=jnp.float32)               # (B, 128)
    for p in range(1, 4):
        y = y + jnp.dot(h_bf[p * B:(p + 1) * B, :], w2_ref[p],
                        preferred_element_type=jnp.float32)
    y = y + bias[1:2, :]

    # ---- bottle: 5 residual 1x1-conv blocks (0.1 folded into wb/bb) ----
    for i in range(5):
        t = jnp.dot(y.astype(jnp.bfloat16), wab_ref[i],
                    preferred_element_type=jnp.float32) + bias[2 + i:3 + i, :]
        t = jnp.where(t > 0, t, 0.2 * t)
        t = jnp.dot(t.astype(jnp.bfloat16), wab_ref[5 + i],
                    preferred_element_type=jnp.float32) + bias[7 + i:8 + i, :]
        y = t + y

    # ---- final linear (lane-padded to 128; wrapper slices [:, :OD]) ----
    out_ref[...] = (jnp.dot(y.astype(jnp.bfloat16), wf_ref[...],
                            preferred_element_type=jnp.float32)
                    + bias[12:13, :])


def init_params(key, in_channels, out_channels, out_num):
    """Deterministic synthetic parameters, PyTorch layouts (OIHW / (out,in))."""
    C = in_channels
    ks = jax.random.split(key, 10)

    def w(k, shape, scale=0.05):
        return jax.random.normal(k, shape, jnp.float32) * scale

    return {
        'w1': w(ks[0], (2 * C, 4 * C, 3, 3)),          # head conv1
        'b1': w(ks[1], (2 * C,)),
        'w2': w(ks[2], (C, 2 * C, 2, 2)),              # head conv2
        'b2': w(ks[3], (C,)),
        'wa': w(ks[4], (5, C, C, 1, 1)),               # res-block conv A (x5)
        'ba': w(ks[5], (5, C)),
        'wb': w(ks[6], (5, C, C, 1, 1)),               # res-block conv B (x5)
        'bb': w(ks[7], (5, C)),
        'wf': w(ks[8], (out_channels * out_num, C)),   # final linear
        'bf': w(ks[9], (out_channels * out_num,)),
    }


def prepare_params(params, in_channels, out_channels, out_num):
    """One-time re-layout of PyTorch-layout params into lane-dense kernel
    operands (zero-padded to 128 lanes).  Done ONCE and cached; the jitted
    forward only does input im2col + pallas_call."""
    C = in_channels
    C2 = 2 * C
    Cin4 = 4 * C
    OD = out_channels * out_num
    assert C2 <= 128 and C <= 128 and OD <= 128, "128-lane padding assumption"

    def pad_cols(m, cols=128):
        m = jnp.asarray(m, jnp.float32)
        return jnp.pad(m, ((0, 0), (0, cols - m.shape[1])))

    def pad2(m, rows=128, cols=128):
        m = jnp.asarray(m, jnp.float32)
        return jnp.pad(m, ((0, rows - m.shape[0]), (0, cols - m.shape[1])))

    # conv1 weight: (2C, 4C, 3, 3) -> (4C*9, 2C) -> lane-pad to (4C*9, 128).
    w1 = pad_cols(params['w1'].reshape(C2, Cin4 * 9).T).astype(jnp.bfloat16)

    # conv2 weight: 4 position blocks, each (2C, C) zero-padded to (128, 128).
    # Block order p = kh*2 + kw matches the patch/position order in the wrapper.
    w2 = jnp.stack([pad2(params['w2'][:, :, kh, kw].T)
                    for kh in range(2) for kw in range(2)],
                   axis=0).astype(jnp.bfloat16)                    # (4, 128, 128)

    # res-block weights, 0.1 residual scale folded into wb; pad to 128x128.
    wa = [pad2(params['wa'][i, :, :, 0, 0].T) for i in range(5)]
    wb = [pad2(params['wb'][i, :, :, 0, 0].T * 0.1) for i in range(5)]
    wab = jnp.stack(wa + wb, axis=0).astype(jnp.bfloat16)          # (10, 128, 128)

    # final linear: (OD, C) -> (C, OD) -> (128, 128).
    wf = pad2(params['wf'].T).astype(jnp.bfloat16)

    # All biases packed into one (13, 128) f32 slab (pad lanes are zero, which
    # keeps the padded channel lanes exactly zero through the whole chain).
    def row(v):
        v = jnp.asarray(v, jnp.float32).reshape(-1)
        return jnp.pad(v, (0, 128 - v.shape[0]))[None, :]

    rows = ([row(params['b1']), row(params['b2'])]
            + [row(params['ba'][i]) for i in range(5)]
            + [row(params['bb'][i] * 0.1) for i in range(5)]       # fold 0.1
            + [row(params['bf'])])
    bias = jnp.concatenate(rows, axis=0)                           # (13, 128)

    return {'w1': w1, 'w2': w2, 'wab': wab, 'wf': wf, 'bias': bias}


@functools.partial(jax.jit, static_argnums=(3, 4))
def mapping_net_forward(prep, x_father, x_mother, out_channels, out_num):
    assert x_father.shape == x_mother.shape
    B = x_father.shape[0]
    x = jnp.concatenate([x_father, x_mother], axis=1)            # (B, 4C, H, W)
    Cin4, H, W = x.shape[1], x.shape[2], x.shape[3]
    OD = out_channels * out_num

    # im2col for conv1 (k=3, s=2, p=1); head output must be 2x2 then 1x1.
    # TODO(synk): for production-size B, fuse this im2col into the kernel
    # (pl.Element / strided index_maps or in-kernel DMA) instead of
    # materializing `patches` in HBM.
    Ho, Wo = (H - 1) // 2 + 1, (W - 1) // 2 + 1
    assert Ho == 2 and Wo == 2, "MappingNet.forward requires 1x1 map after head"
    xp = jnp.pad(x, ((0, 0), (0, 0), (1, 1), (1, 1)))
    # position-major rows: row r = p*B + b, with p = oy*2 + ox
    patches = jnp.stack(
        [xp[:, :, oy * 2:oy * 2 + 3, ox * 2:ox * 2 + 3].reshape(B, Cin4 * 9)
         for oy in range(2) for ox in range(2)], axis=0)
    patches = patches.reshape(4 * B, Cin4 * 9).astype(jnp.bfloat16)

    vmem = pl.BlockSpec(memory_space=pltpu.MemorySpace.VMEM)
    # Grid-less single block: total residency < 1 MiB — far below VMEM on any
    # generation.  For large B, add a batch grid axis with
    # dimension_semantics=("parallel",) (weights via constant index_maps, so
    # they are DMA'd once) to use both v7x TensorCores.
    out = pl.pallas_call(
        mapping_kernel,
        out_shape=jax.ShapeDtypeStruct((B, 128), jnp.float32),   # lane-dense out
        in_specs=[vmem] * 6,
        out_specs=vmem,
    )(patches, prep['w1'], prep['w2'], prep['wab'], prep['wf'], prep['bias'])

    out = out[:, :OD]
    # output_norm is forced False in __init__, so no normalization here.
    out = out.reshape(B, out_num, out_channels)
    return [out[:, i, :] for i in range(out_num)]


def reference_forward(params, x_father, x_mother, out_channels, out_num):
    """Pure-JAX f32 reference mirroring the PyTorch forward (NCHW convs)."""
    dn = ('NCHW', 'OIHW', 'NCHW')
    x = jnp.concatenate([x_father, x_mother], axis=1)
    out = lax.conv_general_dilated(x, params['w1'], (2, 2), [(1, 1), (1, 1)],
                                   dimension_numbers=dn)
    out = out + params['b1'].reshape(1, -1, 1, 1)
    out = jnp.where(out > 0, out, 0.2 * out)
    out = lax.conv_general_dilated(out, params['w2'], (1, 1), [(0, 0), (0, 0)],
                                   dimension_numbers=dn)
    out = out + params['b2'].reshape(1, -1, 1, 1)
    for i in range(5):
        r = out
        t = lax.conv_general_dilated(out, params['wa'][i], (1, 1),
                                     [(0, 0), (0, 0)], dimension_numbers=dn)
        t = t + params['ba'][i].reshape(1, -1, 1, 1)
        t = jnp.where(t > 0, t, 0.2 * t)
        t = lax.conv_general_dilated(t, params['wb'][i], (1, 1),
                                     [(0, 0), (0, 0)], dimension_numbers=dn)
        t = t + params['bb'][i].reshape(1, -1, 1, 1)
        out = 0.1 * t + r
    out = out.reshape(out.shape[0], out.shape[1])
    out = out @ params['wf'].T + params['bf']
    out = out.reshape(out.shape[0], out_num, out_channels)
    return [out[:, i, :] for i in range(out_num)]


if __name__ == "__main__":
    in_channels, out_channels, out_num = 32, 16, 4
    B, H, W = 2, 4, 4

    key = jax.random.PRNGKey(0)
    kp, kf, km = jax.random.split(key, 3)
    params = init_params(kp, in_channels, out_channels, out_num)
    # each parent latent has 2*in_channels channels (concat -> 4*in_channels)
    x_father = jax.random.normal(kf, (B, 2 * in_channels, H, W), jnp.float32)
    x_mother = jax.random.normal(km, (B, 2 * in_channels, H, W), jnp.float32)

    # One-time parameter transform (cached pytree) — not on the per-call path.
    prep = prepare_params(params, in_channels, out_channels, out_num)
    prep = jax.tree_util.tree_map(jax.block_until_ready, prep)

    outs = mapping_net_forward(prep, x_father, x_mother, out_channels, out_num)
    outs = [jax.block_until_ready(o) for o in outs]

    refs = reference_forward(params, x_father, x_mother, out_channels, out_num)
    # bf16 MXU operands (f32 accumulate) -> slightly looser tolerance than f32.
    for o, r in zip(outs, refs):
        np.testing.assert_allclose(np.asarray(o), np.asarray(r),
                                   rtol=2e-2, atol=2e-2)

    print("KERNEL_OK")
</pallas_src>

<mosaic_0001>
module attributes {stable_mosaic.version = 11 : i64} {
  func.func @mapping_kernel(%arg0: memref<8x1152xbf16, #tpu.memory_space<vmem>>, %arg1: memref<1152x128xbf16, #tpu.memory_space<vmem>>, %arg2: memref<4x128x128xbf16, #tpu.memory_space<vmem>>, %arg3: memref<10x128x128xbf16, #tpu.memory_space<vmem>>, %arg4: memref<128x128xbf16, #tpu.memory_space<vmem>>, %arg5: memref<13x128xf32, #tpu.memory_space<vmem>>, %arg6: memref<2x128xf32, #tpu.memory_space<vmem>>) attributes {dimension_semantics = [], scalar_prefetch = 0 : i64, scratch_operands = 0 : i64, tpu.core_type = #tpu.core_type<tc>} {
    %c0 = arith.constant 0 : index
    %c0_0 = arith.constant 0 : index
    %0 = vector.load %arg5[%c0, %c0_0] : memref<13x128xf32, #tpu.memory_space<vmem>>, vector<13x128xf32>
    %c0_1 = arith.constant 0 : index
    %c0_2 = arith.constant 0 : index
    %1 = vector.load %arg0[%c0_1, %c0_2] : memref<8x1152xbf16, #tpu.memory_space<vmem>>, vector<8x1152xbf16>
    %c0_3 = arith.constant 0 : index
    %c0_4 = arith.constant 0 : index
    %2 = vector.load %arg1[%c0_3, %c0_4] : memref<1152x128xbf16, #tpu.memory_space<vmem>>, vector<1152x128xbf16>
    %cst = arith.constant dense<0.000000e+00> : vector<8x128xf32>
    %3 = tpu.matmul %1, %2, %cst {dimension_numbers = #tpu.dot_dimension_numbers<[1], [0], [0], [1], [0, 0, 1, 1], [], []>} : vector<8x1152xbf16>, vector<1152x128xbf16>, vector<8x128xf32> -> vector<8x128xf32>
    %4 = vector.extract_strided_slice %0 {offsets = [0, 0], sizes = [1, 128], strides = [1, 1]} : vector<13x128xf32> to vector<1x128xf32>
    %5 = vector.broadcast %4 : vector<1x128xf32> to vector<8x128xf32>
    %6 = arith.addf %3, %5 : vector<8x128xf32>
    %cst_5 = arith.constant 0.000000e+00 : f32
    %7 = vector.broadcast %cst_5 : f32 to vector<8x128xf32>
    %8 = arith.cmpf ogt, %6, %7 : vector<8x128xf32>
    %cst_6 = arith.constant 2.000000e-01 : f32
    %9 = vector.broadcast %cst_6 : f32 to vector<8x128xf32>
    %10 = arith.mulf %9, %6 : vector<8x128xf32>
    %11 = arith.select %8, %6, %10 : vector<8x128xi1>, vector<8x128xf32>
    %12 = arith.truncf %11 : vector<8x128xf32> to vector<8x128xbf16>
    %13 = vector.extract_strided_slice %12 {offsets = [0, 0], sizes = [2, 128], strides = [1, 1]} : vector<8x128xbf16> to vector<2x128xbf16>
    %c0_7 = arith.constant 0 : index
    %c0_8 = arith.constant 0 : index
    %c0_9 = arith.constant 0 : index
    %14 = vector.load %arg2[%c0_7, %c0_8, %c0_9] : memref<4x128x128xbf16, #tpu.memory_space<vmem>>, vector<1x128x128xbf16>
    %15 = vector.shape_cast %14 : vector<1x128x128xbf16> to vector<128x128xbf16>
    %cst_10 = arith.constant dense<0.000000e+00> : vector<2x128xf32>
    %16 = tpu.matmul %13, %15, %cst_10 {dimension_numbers = #tpu.dot_dimension_numbers<[1], [0], [0], [1], [0, 0, 1, 1], [], []>} : vector<2x128xbf16>, vector<128x128xbf16>, vector<2x128xf32> -> vector<2x128xf32>
    %17 = vector.extract_strided_slice %12 {offsets = [2, 0], sizes = [2, 128], strides = [1, 1]} : vector<8x128xbf16> to vector<2x128xbf16>
    %c1 = arith.constant 1 : index
    %c0_11 = arith.constant 0 : index
    %c0_12 = arith.constant 0 : index
    %18 = vector.load %arg2[%c1, %c0_11, %c0_12] : memref<4x128x128xbf16, #tpu.memory_space<vmem>>, vector<1x128x128xbf16>
    %19 = vector.shape_cast %18 : vector<1x128x128xbf16> to vector<128x128xbf16>
    %cst_13 = arith.constant dense<0.000000e+00> : vector<2x128xf32>
    %20 = tpu.matmul %17, %19, %cst_13 {dimension_numbers = #tpu.dot_dimension_numbers<[1], [0], [0], [1], [0, 0, 1, 1], [], []>} : vector<2x128xbf16>, vector<128x128xbf16>, vector<2x128xf32> -> vector<2x128xf32>
    %21 = arith.addf %16, %20 : vector<2x128xf32>
    %22 = vector.extract_strided_slice %12 {offsets = [4, 0], sizes = [2, 128], strides = [1, 1]} : vector<8x128xbf16> to vector<2x128xbf16>
    %c2 = arith.constant 2 : index
    %c0_14 = arith.constant 0 : index
    %c0_15 = arith.constant 0 : index
    %23 = vector.load %arg2[%c2, %c0_14, %c0_15] : memref<4x128x128xbf16, #tpu.memory_space<vmem>>, vector<1x128x128xbf16>
    %24 = vector.shape_cast %23 : vector<1x128x128xbf16> to vector<128x128xbf16>
    %cst_16 = arith.constant dense<0.000000e+00> : vector<2x128xf32>
    %25 = tpu.matmul %22, %24, %cst_16 {dimension_numbers = #tpu.dot_dimension_numbers<[1], [0], [0], [1], [0, 0, 1, 1], [], []>} : vector<2x128xbf16>, vector<128x128xbf16>, vector<2x128xf32> -> vector<2x128xf32>
    %26 = arith.addf %21, %25 : vector<2x128xf32>
    %27 = vector.extract_strided_slice %12 {offsets = [6, 0], sizes = [2, 128], strides = [1, 1]} : vector<8x128xbf16> to vector<2x128xbf16>
    %c3 = arith.constant 3 : index
    %c0_17 = arith.constant 0 : index
    %c0_18 = arith.constant 0 : index
    %28 = vector.load %arg2[%c3, %c0_17, %c0_18] : memref<4x128x128xbf16, #tpu.memory_space<vmem>>, vector<1x128x128xbf16>
    %29 = vector.shape_cast %28 : vector<1x128x128xbf16> to vector<128x128xbf16>
    %cst_19 = arith.constant dense<0.000000e+00> : vector<2x128xf32>
    %30 = tpu.matmul %27, %29, %cst_19 {dimension_numbers = #tpu.dot_dimension_numbers<[1], [0], [0], [1], [0, 0, 1, 1], [], []>} : vector<2x128xbf16>, vector<128x128xbf16>, vector<2x128xf32> -> vector<2x128xf32>
    %31 = arith.addf %26, %30 : vector<2x128xf32>
    %32 = vector.extract_strided_slice %0 {offsets = [1, 0], sizes = [1, 128], strides = [1, 1]} : vector<13x128xf32> to vector<1x128xf32>
    %33 = vector.broadcast %32 : vector<1x128xf32> to vector<2x128xf32>
    %34 = arith.addf %31, %33 : vector<2x128xf32>
    %35 = arith.truncf %34 : vector<2x128xf32> to vector<2x128xbf16>
    %c0_20 = arith.constant 0 : index
    %c0_21 = arith.constant 0 : index
    %c0_22 = arith.constant 0 : index
    %36 = vector.load %arg3[%c0_20, %c0_21, %c0_22] : memref<10x128x128xbf16, #tpu.memory_space<vmem>>, vector<1x128x128xbf16>
    %37 = vector.shape_cast %36 : vector<1x128x128xbf16> to vector<128x128xbf16>
    %cst_23 = arith.constant dense<0.000000e+00> : vector<2x128xf32>
    %38 = tpu.matmul %35, %37, %cst_23 {dimension_numbers = #tpu.dot_dimension_numbers<[1], [0], [0], [1], [0, 0, 1, 1], [], []>} : vector<2x128xbf16>, vector<128x128xbf16>, vector<2x128xf32> -> vector<2x128xf32>
    %39 = vector.extract_strided_slice %0 {offsets = [2, 0], sizes = [1, 128], strides = [1, 1]} : vector<13x128xf32> to vector<1x128xf32>
    %40 = vector.broadcast %39 : vector<1x128xf32> to vector<2x128xf32>
    %41 = arith.addf %38, %40 : vector<2x128xf32>
    %cst_24 = arith.constant 0.000000e+00 : f32
    %42 = vector.broadcast %cst_24 : f32 to vector<2x128xf32>
    %43 = arith.cmpf ogt, %41, %42 : vector<2x128xf32>
    %cst_25 = arith.constant 2.000000e-01 : f32
    %44 = vector.broadcast %cst_25 : f32 to vector<2x128xf32>
    %45 = arith.mulf %44, %41 : vector<2x128xf32>
    %46 = arith.select %43, %41, %45 : vector<2x128xi1>, vector<2x128xf32>
    %47 = arith.truncf %46 : vector<2x128xf32> to vector<2x128xbf16>
    %c5 = arith.constant 5 : index
    %c0_26 = arith.constant 0 : index
    %c0_27 = arith.constant 0 : index
    %48 = vector.load %arg3[%c5, %c0_26, %c0_27] : memref<10x128x128xbf16, #tpu.memory_space<vmem>>, vector<1x128x128xbf16>
    %49 = vector.shape_cast %48 : vector<1x128x128xbf16> to vector<128x128xbf16>
    %cst_28 = arith.constant dense<0.000000e+00> : vector<2x128xf32>
    %50 = tpu.matmul %47, %49, %cst_28 {dimension_numbers = #tpu.dot_dimension_numbers<[1], [0], [0], [1], [0, 0, 1, 1], [], []>} : vector<2x128xbf16>, vector<128x128xbf16>, vector<2x128xf32> -> vector<2x128xf32>
    %51 = vector.extract_strided_slice %0 {offsets = [7, 0], sizes = [1, 128], strides = [1, 1]} : vector<13x128xf32> to vector<1x128xf32>
    %52 = vector.broadcast %51 : vector<1x128xf32> to vector<2x128xf32>
    %53 = arith.addf %50, %52 : vector<2x128xf32>
    %54 = arith.addf %53, %34 : vector<2x128xf32>
    %55 = arith.truncf %54 : vector<2x128xf32> to vector<2x128xbf16>
    %c1_29 = arith.constant 1 : index
    %c0_30 = arith.constant 0 : index
    %c0_31 = arith.constant 0 : index
    %56 = vector.load %arg3[%c1_29, %c0_30, %c0_31] : memref<10x128x128xbf16, #tpu.memory_space<vmem>>, vector<1x128x128xbf16>
    %57 = vector.shape_cast %56 : vector<1x128x128xbf16> to vector<128x128xbf16>
    %cst_32 = arith.constant dense<0.000000e+00> : vector<2x128xf32>
    %58 = tpu.matmul %55, %57, %cst_32 {dimension_numbers = #tpu.dot_dimension_numbers<[1], [0], [0], [1], [0, 0, 1, 1], [], []>} : vector<2x128xbf16>, vector<128x128xbf16>, vector<2x128xf32> -> vector<2x128xf32>
    %59 = vector.extract_strided_slice %0 {offsets = [3, 0], sizes = [1, 128], strides = [1, 1]} : vector<13x128xf32> to vector<1x128xf32>
    %60 = vector.broadcast %59 : vector<1x128xf32> to vector<2x128xf32>
    %61 = arith.addf %58, %60 : vector<2x128xf32>
    %cst_33 = arith.constant 0.000000e+00 : f32
    %62 = vector.broadcast %cst_33 : f32 to vector<2x128xf32>
    %63 = arith.cmpf ogt, %61, %62 : vector<2x128xf32>
    %cst_34 = arith.constant 2.000000e-01 : f32
    %64 = vector.broadcast %cst_34 : f32 to vector<2x128xf32>
    %65 = arith.mulf %64, %61 : vector<2x128xf32>
    %66 = arith.select %63, %61, %65 : vector<2x128xi1>, vector<2x128xf32>
    %67 = arith.truncf %66 : vector<2x128xf32> to vector<2x128xbf16>
    %c6 = arith.constant 6 : index
    %c0_35 = arith.constant 0 : index
    %c0_36 = arith.constant 0 : index
    %68 = vector.load %arg3[%c6, %c0_35, %c0_36] : memref<10x128x128xbf16, #tpu.memory_space<vmem>>, vector<1x128x128xbf16>
    %69 = vector.shape_cast %68 : vector<1x128x128xbf16> to vector<128x128xbf16>
    %cst_37 = arith.constant dense<0.000000e+00> : vector<2x128xf32>
    %70 = tpu.matmul %67, %69, %cst_37 {dimension_numbers = #tpu.dot_dimension_numbers<[1], [0], [0], [1], [0, 0, 1, 1], [], []>} : vector<2x128xbf16>, vector<128x128xbf16>, vector<2x128xf32> -> vector<2x128xf32>
    %71 = vector.extract_strided_slice %0 {offsets = [8, 0], sizes = [1, 128], strides = [1, 1]} : vector<13x128xf32> to vector<1x128xf32>
    %72 = vector.broadcast %71 : vector<1x128xf32> to vector<2x128xf32>
    %73 = arith.addf %70, %72 : vector<2x128xf32>
    %74 = arith.addf %73, %54 : vector<2x128xf32>
    %75 = arith.truncf %74 : vector<2x128xf32> to vector<2x128xbf16>
    %c2_38 = arith.constant 2 : index
    %c0_39 = arith.constant 0 : index
    %c0_40 = arith.constant 0 : index
    %76 = vector.load %arg3[%c2_38, %c0_39, %c0_40] : memref<10x128x128xbf16, #tpu.memory_space<vmem>>, vector<1x128x128xbf16>
    %77 = vector.shape_cast %76 : vector<1x128x128xbf16> to vector<128x128xbf16>
    %cst_41 = arith.constant dense<0.000000e+00> : vector<2x128xf32>
    %78 = tpu.matmul %75, %77, %cst_41 {dimension_numbers = #tpu.dot_dimension_numbers<[1], [0], [0], [1], [0, 0, 1, 1], [], []>} : vector<2x128xbf16>, vector<128x128xbf16>, vector<2x128xf32> -> vector<2x128xf32>
    %79 = vector.extract_strided_slice %0 {offsets = [4, 0], sizes = [1, 128], strides = [1, 1]} : vector<13x128xf32> to vector<1x128xf32>
    %80 = vector.broadcast %79 : vector<1x128xf32> to vector<2x128xf32>
    %81 = arith.addf %78, %80 : vector<2x128xf32>
    %cst_42 = arith.constant 0.000000e+00 : f32
    %82 = vector.broadcast %cst_42 : f32 to vector<2x128xf32>
    %83 = arith.cmpf ogt, %81, %82 : vector<2x128xf32>
    %cst_43 = arith.constant 2.000000e-01 : f32
    %84 = vector.broadcast %cst_43 : f32 to vector<2x128xf32>
    %85 = arith.mulf %84, %81 : vector<2x128xf32>
    %86 = arith.select %83, %81, %85 : vector<2x128xi1>, vector<2x128xf32>
    %87 = arith.truncf %86 : vector<2x128xf32> to vector<2x128xbf16>
    %c7 = arith.constant 7 : index
    %c0_44 = arith.constant 0 : index
    %c0_45 = arith.constant 0 : index
    %88 = vector.load %arg3[%c7, %c0_44, %c0_45] : memref<10x128x128xbf16, #tpu.memory_space<vmem>>, vector<1x128x128xbf16>
    %89 = vector.shape_cast %88 : vector<1x128x128xbf16> to vector<128x128xbf16>
    %cst_46 = arith.constant dense<0.000000e+00> : vector<2x128xf32>
    %90 = tpu.matmul %87, %89, %cst_46 {dimension_numbers = #tpu.dot_dimension_numbers<[1], [0], [0], [1], [0, 0, 1, 1], [], []>} : vector<2x128xbf16>, vector<128x128xbf16>, vector<2x128xf32> -> vector<2x128xf32>
    %91 = vector.extract_strided_slice %0 {offsets = [9, 0], sizes = [1, 128], strides = [1, 1]} : vector<13x128xf32> to vector<1x128xf32>
    %92 = vector.broadcast %91 : vector<1x128xf32> to vector<2x128xf32>
    %93 = arith.addf %90, %92 : vector<2x128xf32>
    %94 = arith.addf %93, %74 : vector<2x128xf32>
    %95 = arith.truncf %94 : vector<2x128xf32> to vector<2x128xbf16>
    %c3_47 = arith.constant 3 : index
    %c0_48 = arith.constant 0 : index
    %c0_49 = arith.constant 0 : index
    %96 = vector.load %arg3[%c3_47, %c0_48, %c0_49] : memref<10x128x128xbf16, #tpu.memory_space<vmem>>, vector<1x128x128xbf16>
    %97 = vector.shape_cast %96 : vector<1x128x128xbf16> to vector<128x128xbf16>
    %cst_50 = arith.constant dense<0.000000e+00> : vector<2x128xf32>
    %98 = tpu.matmul %95, %97, %cst_50 {dimension_numbers = #tpu.dot_dimension_numbers<[1], [0], [0], [1], [0, 0, 1, 1], [], []>} : vector<2x128xbf16>, vector<128x128xbf16>, vector<2x128xf32> -> vector<2x128xf32>
    %99 = vector.extract_strided_slice %0 {offsets = [5, 0], sizes = [1, 128], strides = [1, 1]} : vector<13x128xf32> to vector<1x128xf32>
    %100 = vector.broadcast %99 : vector<1x128xf32> to vector<2x128xf32>
    %101 = arith.addf %98, %100 : vector<2x128xf32>
    %cst_51 = arith.constant 0.000000e+00 : f32
    %102 = vector.broadcast %cst_51 : f32 to vector<2x128xf32>
    %103 = arith.cmpf ogt, %101, %102 : vector<2x128xf32>
    %cst_52 = arith.constant 2.000000e-01 : f32
    %104 = vector.broadcast %cst_52 : f32 to vector<2x128xf32>
    %105 = arith.mulf %104, %101 : vector<2x128xf32>
    %106 = arith.select %103, %101, %105 : vector<2x128xi1>, vector<2x128xf32>
    %107 = arith.truncf %106 : vector<2x128xf32> to vector<2x128xbf16>
    %c8 = arith.constant 8 : index
    %c0_53 = arith.constant 0 : index
    %c0_54 = arith.constant 0 : index
    %108 = vector.load %arg3[%c8, %c0_53, %c0_54] : memref<10x128x128xbf16, #tpu.memory_space<vmem>>, vector<1x128x128xbf16>
    %109 = vector.shape_cast %108 : vector<1x128x128xbf16> to vector<128x128xbf16>
    %cst_55 = arith.constant dense<0.000000e+00> : vector<2x128xf32>
    %110 = tpu.matmul %107, %109, %cst_55 {dimension_numbers = #tpu.dot_dimension_numbers<[1], [0], [0], [1], [0, 0, 1, 1], [], []>} : vector<2x128xbf16>, vector<128x128xbf16>, vector<2x128xf32> -> vector<2x128xf32>
    %111 = vector.extract_strided_slice %0 {offsets = [10, 0], sizes = [1, 128], strides = [1, 1]} : vector<13x128xf32> to vector<1x128xf32>
    %112 = vector.broadcast %111 : vector<1x128xf32> to vector<2x128xf32>
    %113 = arith.addf %110, %112 : vector<2x128xf32>
    %114 = arith.addf %113, %94 : vector<2x128xf32>
    %115 = arith.truncf %114 : vector<2x128xf32> to vector<2x128xbf16>
    %c4 = arith.constant 4 : index
    %c0_56 = arith.constant 0 : index
    %c0_57 = arith.constant 0 : index
    %116 = vector.load %arg3[%c4, %c0_56, %c0_57] : memref<10x128x128xbf16, #tpu.memory_space<vmem>>, vector<1x128x128xbf16>
    %117 = vector.shape_cast %116 : vector<1x128x128xbf16> to vector<128x128xbf16>
    %cst_58 = arith.constant dense<0.000000e+00> : vector<2x128xf32>
    %118 = tpu.matmul %115, %117, %cst_58 {dimension_numbers = #tpu.dot_dimension_numbers<[1], [0], [0], [1], [0, 0, 1, 1], [], []>} : vector<2x128xbf16>, vector<128x128xbf16>, vector<2x128xf32> -> vector<2x128xf32>
    %119 = vector.extract_strided_slice %0 {offsets = [6, 0], sizes = [1, 128], strides = [1, 1]} : vector<13x128xf32> to vector<1x128xf32>
    %120 = vector.broadcast %119 : vector<1x128xf32> to vector<2x128xf32>
    %121 = arith.addf %118, %120 : vector<2x128xf32>
    %cst_59 = arith.constant 0.000000e+00 : f32
    %122 = vector.broadcast %cst_59 : f32 to vector<2x128xf32>
    %123 = arith.cmpf ogt, %121, %122 : vector<2x128xf32>
    %cst_60 = arith.constant 2.000000e-01 : f32
    %124 = vector.broadcast %cst_60 : f32 to vector<2x128xf32>
    %125 = arith.mulf %124, %121 : vector<2x128xf32>
    %126 = arith.select %123, %121, %125 : vector<2x128xi1>, vector<2x128xf32>
    %127 = arith.truncf %126 : vector<2x128xf32> to vector<2x128xbf16>
    %c9 = arith.constant 9 : index
    %c0_61 = arith.constant 0 : index
    %c0_62 = arith.constant 0 : index
    %128 = vector.load %arg3[%c9, %c0_61, %c0_62] : memref<10x128x128xbf16, #tpu.memory_space<vmem>>, vector<1x128x128xbf16>
    %129 = vector.shape_cast %128 : vector<1x128x128xbf16> to vector<128x128xbf16>
    %cst_63 = arith.constant dense<0.000000e+00> : vector<2x128xf32>
    %130 = tpu.matmul %127, %129, %cst_63 {dimension_numbers = #tpu.dot_dimension_numbers<[1], [0], [0], [1], [0, 0, 1, 1], [], []>} : vector<2x128xbf16>, vector<128x128xbf16>, vector<2x128xf32> -> vector<2x128xf32>
    %131 = vector.extract_strided_slice %0 {offsets = [11, 0], sizes = [1, 128], strides = [1, 1]} : vector<13x128xf32> to vector<1x128xf32>
    %132 = vector.broadcast %131 : vector<1x128xf32> to vector<2x128xf32>
    %133 = arith.addf %130, %132 : vector<2x128xf32>
    %134 = arith.addf %133, %114 : vector<2x128xf32>
    %135 = arith.truncf %134 : vector<2x128xf32> to vector<2x128xbf16>
    %c0_64 = arith.constant 0 : index
    %c0_65 = arith.constant 0 : index
    %136 = vector.load %arg4[%c0_64, %c0_65] : memref<128x128xbf16, #tpu.memory_space<vmem>>, vector<128x128xbf16>
    %cst_66 = arith.constant dense<0.000000e+00> : vector<2x128xf32>
    %137 = tpu.matmul %135, %136, %cst_66 {dimension_numbers = #tpu.dot_dimension_numbers<[1], [0], [0], [1], [0, 0, 1, 1], [], []>} : vector<2x128xbf16>, vector<128x128xbf16>, vector<2x128xf32> -> vector<2x128xf32>
    %138 = vector.extract_strided_slice %0 {offsets = [12, 0], sizes = [1, 128], strides = [1, 1]} : vector<13x128xf32> to vector<1x128xf32>
    %139 = vector.broadcast %138 : vector<1x128xf32> to vector<2x128xf32>
    %140 = arith.addf %137, %139 : vector<2x128xf32>
    %c0_67 = arith.constant 0 : index
    %c0_68 = arith.constant 0 : index
    %141 = vector.load %arg6[%c0_67, %c0_68] : memref<2x128xf32, #tpu.memory_space<vmem>>, vector<2x128xf32>
    tpu.vector_store %arg6[%c0_67, %c0_68], %140 {strides = array<i32>} : memref<2x128xf32, #tpu.memory_space<vmem>>, vector<2x128xf32>,
    return
  }
}

</mosaic_0001>

<llo_original>
// kernel: mapping_net_forward.1
$region0: #{mapping_net_forward.1}
  #allocation0 [shape = 'u32[]', space=smem, size = 0x4, offset = 0x4, fixed_abs, tag = 'smem constant byte address 0x4 - core index']
  #allocation1 [shape = 'u32[144,128]{1,0:T(1,128)}', space=vmem, size = 0x12000, scoped, tag = 'internal scratch']
  %s0 = inlined_call_operand.vmem [shape: bf16[8,1152], index: 0, kind: input, shape index: {}]
  %s1 = inlined_call_operand.vmem [shape: bf16[1152,128], index: 1, kind: input, shape index: {}]
  %s2 = inlined_call_operand.vmem [shape: bf16[4,128,128], index: 2, kind: input, shape index: {}]
  %s3 = inlined_call_operand.vmem [shape: bf16[10,128,128], index: 3, kind: input, shape index: {}]
  %s4 = inlined_call_operand.vmem [shape: bf16[128,128], index: 4, kind: input, shape index: {}]
  %s5 = inlined_call_operand.vmem [shape: f32[13,128], index: 5, kind: input, shape index: {}]
  %s6 = inlined_call_operand.vmem [shape: f32[2,128], index: 6, kind: output, shape index: {}]
  %s7 = sld [smem:[#allocation0]]
  $region34: #{mapping_net_forward.1} parent=0
    _
  %s9 = ssub.s32 1, %s7
  %s10 = scalar_select 0, %s9, %s7
  // Predicated region
  $region2: #{mapping_net_forward.1} parent=0 // pred_check
    _
  $region3: #{mapping_net_forward.1} parent=0 // pred_check_branch
    %12 = sbr.rel (0) target = $region5
  $region4: #{mapping_net_forward.1} parent=0 // pred_region
    _
  $region5: #{mapping_net_forward.1} parent=0 // pred_fallthru
    _
  // Predicated region
  $region6: #{mapping_net_forward.1} parent=0 // pred_check
    _
  $region7: #{mapping_net_forward.1} parent=0 // pred_check_branch
    %14 = sbr.rel (0) target = $region9
  $region8: #{mapping_net_forward.1} parent=0 // pred_region
    _
  $region9: #{mapping_net_forward.1} parent=0 // pred_fallthru
    _
  // Predicated region
  $region10: #{mapping_net_forward.1} parent=0 // pred_check
    _
  $region11: #{mapping_net_forward.1} parent=0 // pred_check_branch
    %16 = sbr.rel (0) target = $region13
  $region12: #{mapping_net_forward.1} parent=0 // pred_region
    _
  $region13: #{mapping_net_forward.1} parent=0 // pred_fallthru
    _
  // Predicated region
  $region14: #{mapping_net_forward.1} parent=0 // pred_check
    _
  $region15: #{mapping_net_forward.1} parent=0 // pred_check_branch
    %18 = sbr.rel (0) target = $region17
  $region16: #{mapping_net_forward.1} parent=0 // pred_region
    _
  $region17: #{mapping_net_forward.1} parent=0 // pred_fallthru
    _
  // Predicated region
  $region18: #{mapping_net_forward.1} parent=0 // pred_check
    _
  $region19: #{mapping_net_forward.1} parent=0 // pred_check_branch
    %20 = sbr.rel (0) target = $region21
  $region20: #{mapping_net_forward.1} parent=0 // pred_region
    _
  $region21: #{mapping_net_forward.1} parent=0 // pred_fallthru
    _
  // Predicated region
  $region22: #{mapping_net_forward.1} parent=0 // pred_check
    _
  $region23: #{mapping_net_forward.1} parent=0 // pred_check_branch
    %22 = sbr.rel (0) target = $region25
  $region24: #{mapping_net_forward.1} parent=0 // pred_region
    _
  $region25: #{mapping_net_forward.1} parent=0 // pred_fallthru
    _
  %v24 = vld [vmem:[%s5] sm:$0xff]
  %v25 = vld [vmem:[%s5 + $0x8] sm:$0x1f]
  %v26 = vld [vmem:[%s0] sm:$0xff]
  %v27 = vld [vmem:[%s0 + $0x8] sm:$0xff]
  %v28 = vld [vmem:[%s0 + $0x10] sm:$0xff]
  %v29 = vld [vmem:[%s0 + $0x18] sm:$0xff]
  %v30 = vld [vmem:[%s0 + $0x20] sm:$0xf]
  %v31 = vld [vmem:[%s1] sm:$0xf]
  %v32 = vld [vmem:[%s1 + $0x4] sm:$0xf]
  %v33 = vld [vmem:[%s1 + $0x8] sm:$0xf]
  %v34 = vld [vmem:[%s1 + $0xc] sm:$0xf]
  %v35 = vld [vmem:[%s1 + $0x10] sm:$0xf]
  %v36 = vld [vmem:[%s1 + $0x14] sm:$0xf]
  %v37 = vld [vmem:[%s1 + $0x18] sm:$0xf]
  %v38 = vld [vmem:[%s1 + $0x1c] sm:$0xf]
  %v39 = vld [vmem:[%s1 + $0x20] sm:$0xf]
  %v40 = vld [vmem:[%s1 + $0x24] sm:$0xf]
  %v41 = vld [vmem:[%s1 + $0x28] sm:$0xf]
  %v42 = vld [vmem:[%s1 + $0x2c] sm:$0xf]
  %v43 = vld [vmem:[%s1 + $0x30] sm:$0xf]
  %v44 = vld [vmem:[%s1 + $0x34] sm:$0xf]
  %v45 = vld [vmem:[%s1 + $0x38] sm:$0xf]
  %v46 = vld [vmem:[%s1 + $0x3c] sm:$0xf]
  %v47 = vld [vmem:[%s1 + $0x40] sm:$0xf]
  %v48 = vld [vmem:[%s1 + $0x44] sm:$0xf]
  %v49 = vld [vmem:[%s1 + $0x48] sm:$0xf]
  %v50 = vld [vmem:[%s1 + $0x4c] sm:$0xf]
  %v51 = vld [vmem:[%s1 + $0x50] sm:$0xf]
  %v52 = vld [vmem:[%s1 + $0x54] sm:$0xf]
  %v53 = vld [vmem:[%s1 + $0x58] sm:$0xf]
  %v54 = vld [vmem:[%s1 + $0x5c] sm:$0xf]
  %v55 = vld [vmem:[%s1 + $0x60] sm:$0xf]
  %v56 = vld [vmem:[%s1 + $0x64] sm:$0xf]
  %v57 = vld [vmem:[%s1 + $0x68] sm:$0xf]
  %v58 = vld [vmem:[%s1 + $0x6c] sm:$0xf]
  %v59 = vld [vmem:[%s1 + $0x70] sm:$0xf]
  %v60 = vld [vmem:[%s1 + $0x74] sm:$0xf]
  %v61 = vld [vmem:[%s1 + $0x78] sm:$0xf]
  %v62 = vld [vmem:[%s1 + $0x7c] sm:$0xf]
  %v63 = vld [vmem:[%s1 + $0x80] sm:$0xf]
  %v64 = vld [vmem:[%s1 + $0x84] sm:$0xf]
  %v65 = vld [vmem:[%s1 + $0x88] sm:$0xf]
  %v66 = vld [vmem:[%s1 + $0x8c] sm:$0xf]
  %v67 = vld [vmem:[%s1 + $0x90] sm:$0xf]
  %v68 = vld [vmem:[%s1 + $0x94] sm:$0xf]
  %v69 = vld [vmem:[%s1 + $0x98] sm:$0xf]
  %v70 = vld [vmem:[%s1 + $0x9c] sm:$0xf]
  %v71 = vld [vmem:[%s1 + $0xa0] sm:$0xf]
  %v72 = vld [vmem:[%s1 + $0xa4] sm:$0xf]
  %v73 = vld [vmem:[%s1 + $0xa8] sm:$0xf]
  %v74 = vld [vmem:[%s1 + $0xac] sm:$0xf]
  %v75 = vld [vmem:[%s1 + $0xb0] sm:$0xf]
  %v76 = vld [vmem:[%s1 + $0xb4] sm:$0xf]
  %v77 = vld [vmem:[%s1 + $0xb8] sm:$0xf]
  %v78 = vld [vmem:[%s1 + $0xbc] sm:$0xf]
  %v79 = vld [vmem:[%s1 + $0xc0] sm:$0xf]
  %v80 = vld [vmem:[%s1 + $0xc4] sm:$0xf]
  %v81 = vld [vmem:[%s1 + $0xc8] sm:$0xf]
  %v82 = vld [vmem:[%s1 + $0xcc] sm:$0xf]
  %v83 = vld [vmem:[%s1 + $0xd0] sm:$0xf]
  %v84 = vld [vmem:[%s1 + $0xd4] sm:$0xf]
  %v85 = vld [vmem:[%s1 + $0xd8] sm:$0xf]
  %v86 = vld [vmem:[%s1 + $0xdc] sm:$0xf]
  %v87 = vld [vmem:[%s1 + $0xe0] sm:$0xf]
  %v88 = vld [vmem:[%s1 + $0xe4] sm:$0xf]
  %v89 = vld [vmem:[%s1 + $0xe8] sm:$0xf]
  %v90 = vld [vmem:[%s1 + $0xec] sm:$0xf]
  %v91 = vld [vmem:[%s1 + $0xf0] sm:$0xf]
  %v92 = vld [vmem:[%s1 + $0xf4] sm:$0xf]
  %v93 = vld [vmem:[%s1 + $0xf8] sm:$0xf]
  %v94 = vld [vmem:[%s1 + $0xfc] sm:$0xf]
  %v95 = vld [vmem:[%s1 + $0x100] sm:$0xf]
  %v96 = vld [vmem:[%s1 + $0x104] sm:$0xf]
  %v97 = vld [vmem:[%s1 + $0x108] sm:$0xf]
  %v98 = vld [vmem:[%s1 + $0x10c] sm:$0xf]
  %v99 = vld [vmem:[%s1 + $0x110] sm:$0xf]
  %v100 = vld [vmem:[%s1 + $0x114] sm:$0xf]
  %v101 = vld [vmem:[%s1 + $0x118] sm:$0xf]
  %v102 = vld [vmem:[%s1 + $0x11c] sm:$0xf]
  %v103 = vld [vmem:[%s1 + $0x120] sm:$0xf]
  %v104 = vld [vmem:[%s1 + $0x124] sm:$0xf]
  %v105 = vld [vmem:[%s1 + $0x128] sm:$0xf]
  %v106 = vld [vmem:[%s1 + $0x12c] sm:$0xf]
  %v107 = vld [vmem:[%s1 + $0x130] sm:$0xf]
  %v108 = vld [vmem:[%s1 + $0x134] sm:$0xf]
  %v109 = vld [vmem:[%s1 + $0x138] sm:$0xf]
  %v110 = vld [vmem:[%s1 + $0x13c] sm:$0xf]
  %v111 = vld [vmem:[%s1 + $0x140] sm:$0xf]
  %v112 = vld [vmem:[%s1 + $0x144] sm:$0xf]
  %v113 = vld [vmem:[%s1 + $0x148] sm:$0xf]
  %v114 = vld [vmem:[%s1 + $0x14c] sm:$0xf]
  %v115 = vld [vmem:[%s1 + $0x150] sm:$0xf]
  %v116 = vld [vmem:[%s1 + $0x154] sm:$0xf]
  %v117 = vld [vmem:[%s1 + $0x158] sm:$0xf]
  %v118 = vld [vmem:[%s1 + $0x15c] sm:$0xf]
  %v119 = vld [vmem:[%s1 + $0x160] sm:$0xf]
  %v120 = vld [vmem:[%s1 + $0x164] sm:$0xf]
  %v121 = vld [vmem:[%s1 + $0x168] sm:$0xf]
  %v122 = vld [vmem:[%s1 + $0x16c] sm:$0xf]
  %v123 = vld [vmem:[%s1 + $0x170] sm:$0xf]
  %v124 = vld [vmem:[%s1 + $0x174] sm:$0xf]
  %v125 = vld [vmem:[%s1 + $0x178] sm:$0xf]
  %v126 = vld [vmem:[%s1 + $0x17c] sm:$0xf]
  %v127 = vld [vmem:[%s1 + $0x180] sm:$0xf]
  %v128 = vld [vmem:[%s1 + $0x184] sm:$0xf]
  %v129 = vld [vmem:[%s1 + $0x188] sm:$0xf]
  %v130 = vld [vmem:[%s1 + $0x18c] sm:$0xf]
  %v131 = vld [vmem:[%s1 + $0x190] sm:$0xf]
  %v132 = vld [vmem:[%s1 + $0x194] sm:$0xf]
  %v133 = vld [vmem:[%s1 + $0x198] sm:$0xf]
  %v134 = vld [vmem:[%s1 + $0x19c] sm:$0xf]
  %v135 = vld [vmem:[%s1 + $0x1a0] sm:$0xf]
  %v136 = vld [vmem:[%s1 + $0x1a4] sm:$0xf]
  %v137 = vld [vmem:[%s1 + $0x1a8] sm:$0xf]
  %v138 = vld [vmem:[%s1 + $0x1ac] sm:$0xf]
  %v139 = vld [vmem:[%s1 + $0x1b0] sm:$0xf]
  %v140 = vld [vmem:[%s1 + $0x1b4] sm:$0xf]
  %v141 = vld [vmem:[%s1 + $0x1b8] sm:$0xf]
  %v142 = vld [vmem:[%s1 + $0x1bc] sm:$0xf]
  %v143 = vld [vmem:[%s1 + $0x1c0] sm:$0xf]
  %v144 = vld [vmem:[%s1 + $0x1c4] sm:$0xf]
  %v145 = vld [vmem:[%s1 + $0x1c8] sm:$0xf]
  %v146 = vld [vmem:[%s1 + $0x1cc] sm:$0xf]
  %v147 = vld [vmem:[%s1 + $0x1d0] sm:$0xf]
  %v148 = vld [vmem:[%s1 + $0x1d4] sm:$0xf]
  %v149 = vld [vmem:[%s1 + $0x1d8] sm:$0xf]
  %v150 = vld [vmem:[%s1 + $0x1dc] sm:$0xf]
  %v151 = vld [vmem:[%s1 + $0x1e0] sm:$0xf]
  %v152 = vld [vmem:[%s1 + $0x1e4] sm:$0xf]
  %v153 = vld [vmem:[%s1 + $0x1e8] sm:$0xf]
  %v154 = vld [vmem:[%s1 + $0x1ec] sm:$0xf]
  %v155 = vld [vmem:[%s1 + $0x1f0] sm:$0xf]
  %v156 = vld [vmem:[%s1 + $0x1f4] sm:$0xf]
  %v157 = vld [vmem:[%s1 + $0x1f8] sm:$0xf]
  %v158 = vld [vmem:[%s1 + $0x1fc] sm:$0xf]
  %v159 = vld [vmem:[%s1 + $0x200] sm:$0xf]
  %v160 = vld [vmem:[%s1 + $0x204] sm:$0xf]
  %v161 = vld [vmem:[%s1 + $0x208] sm:$0xf]
  %v162 = vld [vmem:[%s1 + $0x20c] sm:$0xf]
  %v163 = vld [vmem:[%s1 + $0x210] sm:$0xf]
  %v164 = vld [vmem:[%s1 + $0x214] sm:$0xf]
  %v165 = vld [vmem:[%s1 + $0x218] sm:$0xf]
  %v166 = vld [vmem:[%s1 + $0x21c] sm:$0xf]
  %v167 = vld [vmem:[%s1 + $0x220] sm:$0xf]
  %v168 = vld [vmem:[%s1 + $0x224] sm:$0xf]
  %v169 = vld [vmem:[%s1 + $0x228] sm:$0xf]
  %v170 = vld [vmem:[%s1 + $0x22c] sm:$0xf]
  %v171 = vld [vmem:[%s1 + $0x230] sm:$0xf]
  %v172 = vld [vmem:[%s1 + $0x234] sm:$0xf]
  %v173 = vld [vmem:[%s1 + $0x238] sm:$0xf]
  %v174 = vld [vmem:[%s1 + $0x23c] sm:$0xf]
  %v175 = vlaneseq
  %v176 = vshrl.u32 %v175, 7
  %v177 = vsub.s32 0, %v176
  %v178 = vrot.slane %v24, %v177
  %v184 = vunpack.c.l.b16 %v26
  %v185 = vunpack.c.h.b16 %v26
  %v186 = vunpack.c.l.b16 %v27
  %v187 = vunpack.c.h.b16 %v27
  %v188 = vunpack.c.l.b16 %v28
  %v189 = vunpack.c.h.b16 %v28
  %v190 = vunpack.c.l.b16 %v29
  %v191 = vunpack.c.h.b16 %v29
  %v192 = vunpack.c.l.b16 %v30
  %v193 = vpack.c.b16 %v184, %v184
  %v194 = vpack.c.b16 %v185, %v185
  %v195 = vpack.c.b16 %v186, %v186
  %v196 = vpack.c.b16 %v187, %v187
  %v197 = vpack.c.b16 %v188, %v188
  %v198 = vpack.c.b16 %v189, %v189
  %v199 = vpack.c.b16 %v190, %v190
  %v200 = vpack.c.b16 %v191, %v191
  %v201 = vpack.c.b16 %v192, %v192
  %v355 = vunpack.c.l.b16 %v31
  %v356 = vunpack.c.l.b16 %v32
  %v357 = vunpack.c.l.b16 %v33
  %v358 = vunpack.c.l.b16 %v34
  %v359 = vunpack.c.l.b16 %v35
  %v360 = vunpack.c.l.b16 %v36
  %v361 = vunpack.c.l.b16 %v37
  %v362 = vunpack.c.l.b16 %v38
  %v363 = vunpack.c.l.b16 %v39
  %v364 = vunpack.c.l.b16 %v40
  %v365 = vunpack.c.l.b16 %v41
  %v366 = vunpack.c.l.b16 %v42
  %v367 = vunpack.c.l.b16 %v43
  %v368 = vunpack.c.l.b16 %v44
  %v369 = vunpack.c.l.b16 %v45
  %v370 = vunpack.c.l.b16 %v46
  %v371 = vunpack.c.l.b16 %v47
  %v372 = vunpack.c.l.b16 %v48
  %v373 = vunpack.c.l.b16 %v49
  %v374 = vunpack.c.l.b16 %v50
  %v375 = vunpack.c.l.b16 %v51
  %v376 = vunpack.c.l.b16 %v52
  %v377 = vunpack.c.l.b16 %v53
  %v378 = vunpack.c.l.b16 %v54
  %v379 = vunpack.c.l.b16 %v55
  %v380 = vunpack.c.l.b16 %v56
  %v381 = vunpack.c.l.b16 %v57
  %v382 = vunpack.c.l.b16 %v58
  %v383 = vunpack.c.l.b16 %v59
  %v384 = vunpack.c.l.b16 %v60
  %v385 = vunpack.c.l.b16 %v61
  %v386 = vunpack.c.l.b16 %v62
  %v387 = vunpack.c.l.b16 %v63
  %v388 = vunpack.c.l.b16 %v64
  %v389 = vunpack.c.l.b16 %v65
  %v390 = vunpack.c.l.b16 %v66
  %v391 = vunpack.c.l.b16 %v67
  %v392 = vunpack.c.l.b16 %v68
  %v393 = vunpack.c.l.b16 %v69
  %v394 = vunpack.c.l.b16 %v70
  %v395 = vunpack.c.l.b16 %v71
  %v396 = vunpack.c.l.b16 %v72
  %v397 = vunpack.c.l.b16 %v73
  %v398 = vunpack.c.l.b16 %v74
  %v399 = vunpack.c.l.b16 %v75
  %v400 = vunpack.c.l.b16 %v76
  %v401 = vunpack.c.l.b16 %v77
  %v402 = vunpack.c.l.b16 %v78
  %v403 = vunpack.c.l.b16 %v79
  %v404 = vunpack.c.l.b16 %v80
  %v405 = vunpack.c.l.b16 %v81
  %v406 = vunpack.c.l.b16 %v82
  %v407 = vunpack.c.l.b16 %v83
  %v408 = vunpack.c.l.b16 %v84
  %v409 = vunpack.c.l.b16 %v85
  %v410 = vunpack.c.l.b16 %v86
  %v411 = vunpack.c.l.b16 %v87
  %v412 = vunpack.c.l.b16 %v88
  %v413 = vunpack.c.l.b16 %v89
  %v414 = vunpack.c.l.b16 %v90
  %v415 = vunpack.c.l.b16 %v91
  %v416 = vunpack.c.l.b16 %v92
  %v417 = vunpack.c.l.b16 %v93
  %v418 = vunpack.c.l.b16 %v94
  %v419 = vunpack.c.l.b16 %v95
  %v420 = vunpack.c.l.b16 %v96
  %v421 = vunpack.c.l.b16 %v97
  %v422 = vunpack.c.l.b16 %v98
  %v423 = vunpack.c.l.b16 %v99
  %v424 = vunpack.c.l.b16 %v100
  %v425 = vunpack.c.l.b16 %v101
  %v426 = vunpack.c.l.b16 %v102
  %v427 = vunpack.c.l.b16 %v103
  %v428 = vunpack.c.l.b16 %v104
  %v429 = vunpack.c.l.b16 %v105
  %v430 = vunpack.c.l.b16 %v106
  %v431 = vunpack.c.l.b16 %v107
  %v432 = vunpack.c.l.b16 %v108
  %v433 = vunpack.c.l.b16 %v109
  %v434 = vunpack.c.l.b16 %v110
  %v435 = vunpack.c.l.b16 %v111
  %v436 = vunpack.c.l.b16 %v112
  %v437 = vunpack.c.l.b16 %v113
  %v438 = vunpack.c.l.b16 %v114
  %v439 = vunpack.c.l.b16 %v115
  %v440 = vunpack.c.l.b16 %v116
  %v441 = vunpack.c.l.b16 %v117
  %v442 = vunpack.c.l.b16 %v118
  %v443 = vunpack.c.l.b16 %v119
  %v444 = vunpack.c.l.b16 %v120
  %v445 = vunpack.c.l.b16 %v121
  %v446 = vunpack.c.l.b16 %v122
  %v447 = vunpack.c.l.b16 %v123
  %v448 = vunpack.c.l.b16 %v124
  %v449 = vunpack.c.l.b16 %v125
  %v450 = vunpack.c.l.b16 %v126
  %v451 = vunpack.c.l.b16 %v127
  %v452 = vunpack.c.l.b16 %v128
  %v453 = vunpack.c.l.b16 %v129
  %v454 = vunpack.c.l.b16 %v130
  %v455 = vunpack.c.l.b16 %v131
  %v456 = vunpack.c.l.b16 %v132
  %v457 = vunpack.c.l.b16 %v133
  %v458 = vunpack.c.l.b16 %v134
  %v459 = vunpack.c.l.b16 %v135
  %v460 = vunpack.c.l.b16 %v136
  %v461 = vunpack.c.l.b16 %v137
  %v462 = vunpack.c.l.b16 %v138
  %v463 = vunpack.c.l.b16 %v139
  %v464 = vunpack.c.l.b16 %v140
  %v465 = vunpack.c.l.b16 %v141
  %v466 = vunpack.c.l.b16 %v142
  %v467 = vunpack.c.l.b16 %v143
  %v468 = vunpack.c.l.b16 %v144
  %v469 = vunpack.c.l.b16 %v145
  %v470 = vunpack.c.l.b16 %v146
  %v471 = vunpack.c.l.b16 %v147
  %v472 = vunpack.c.l.b16 %v148
  %v473 = vunpack.c.l.b16 %v149
  %v474 = vunpack.c.l.b16 %v150
  %v475 = vunpack.c.l.b16 %v151
  %v476 = vunpack.c.l.b16 %v152
  %v477 = vunpack.c.l.b16 %v153
  %v478 = vunpack.c.l.b16 %v154
  %v479 = vunpack.c.l.b16 %v155
  %v480 = vunpack.c.l.b16 %v156
  %v481 = vunpack.c.l.b16 %v157
  %v482 = vunpack.c.l.b16 %v158
  %v483 = vunpack.c.l.b16 %v159
  %v484 = vunpack.c.l.b16 %v160
  %v485 = vunpack.c.l.b16 %v161
  %v486 = vunpack.c.l.b16 %v162
  %v487 = vunpack.c.l.b16 %v163
  %v488 = vunpack.c.l.b16 %v164
  %v489 = vunpack.c.l.b16 %v165
  %v490 = vunpack.c.l.b16 %v166
  %v491 = vunpack.c.l.b16 %v167
  %v492 = vunpack.c.l.b16 %v168
  %v493 = vunpack.c.l.b16 %v169
  %v494 = vunpack.c.l.b16 %v170
  %v495 = vunpack.c.l.b16 %v171
  %v496 = vunpack.c.l.b16 %v172
  %v497 = vunpack.c.l.b16 %v173
  %v498 = vunpack.c.l.b16 %v174
  %v499 = vpack.c.b16 %v356, %v355
  %v500 = vpack.c.b16 %v358, %v357
  %v501 = vpack.c.b16 %v360, %v359
  %v502 = vpack.c.b16 %v362, %v361
  %v503 = vpack.c.b16 %v364, %v363
  %v504 = vpack.c.b16 %v366, %v365
  %v505 = vpack.c.b16 %v368, %v367
  %v506 = vpack.c.b16 %v370, %v369
  %v507 = vpack.c.b16 %v372, %v371
  %v508 = vpack.c.b16 %v374, %v373
  %v509 = vpack.c.b16 %v376, %v375
  %v510 = vpack.c.b16 %v378, %v377
  %v511 = vpack.c.b16 %v380, %v379
  %v512 = vpack.c.b16 %v382, %v381
  %v513 = vpack.c.b16 %v384, %v383
  %v514 = vpack.c.b16 %v386, %v385
  %v515 = vpack.c.b16 %v388, %v387
  %v516 = vpack.c.b16 %v390, %v389
  %v517 = vpack.c.b16 %v392, %v391
  %v518 = vpack.c.b16 %v394, %v393
  %v519 = vpack.c.b16 %v396, %v395
  %v520 = vpack.c.b16 %v398, %v397
  %v521 = vpack.c.b16 %v400, %v399
  %v522 = vpack.c.b16 %v402, %v401
  %v523 = vpack.c.b16 %v404, %v403
  %v524 = vpack.c.b16 %v406, %v405
  %v525 = vpack.c.b16 %v408, %v407
  %v526 = vpack.c.b16 %v410, %v409
  %v527 = vpack.c.b16 %v412, %v411
  %v528 = vpack.c.b16 %v414, %v413
  %v529 = vpack.c.b16 %v416, %v415
  %v530 = vpack.c.b16 %v418, %v417
  %v531 = vpack.c.b16 %v420, %v419
  %v532 = vpack.c.b16 %v422, %v421
  %v533 = vpack.c.b16 %v424, %v423
  %v534 = vpack.c.b16 %v426, %v425
  %v535 = vpack.c.b16 %v428, %v427
  %v536 = vpack.c.b16 %v430, %v429
  %v537 = vpack.c.b16 %v432, %v431
  %v538 = vpack.c.b16 %v434, %v433
  %v539 = vpack.c.b16 %v436, %v435
  %v540 = vpack.c.b16 %v438, %v437
  %v541 = vpack.c.b16 %v440, %v439
  %v542 = vpack.c.b16 %v442, %v441
  %v543 = vpack.c.b16 %v444, %v443
  %v544 = vpack.c.b16 %v446, %v445
  %v545 = vpack.c.b16 %v448, %v447
  %v546 = vpack.c.b16 %v450, %v449
  %v547 = vpack.c.b16 %v452, %v451
  %v548 = vpack.c.b16 %v454, %v453
  %v549 = vpack.c.b16 %v456, %v455
  %v550 = vpack.c.b16 %v458, %v457
  %v551 = vpack.c.b16 %v460, %v459
  %v552 = vpack.c.b16 %v462, %v461
  %v553 = vpack.c.b16 %v464, %v463
  %v554 = vpack.c.b16 %v466, %v465
  %v555 = vpack.c.b16 %v468, %v467
  %v556 = vpack.c.b16 %v470, %v469
  %v557 = vpack.c.b16 %v472, %v471
  %v558 = vpack.c.b16 %v474, %v473
  %v559 = vpack.c.b16 %v476, %v475
  %v560 = vpack.c.b16 %v478, %v477
  %v561 = vpack.c.b16 %v480, %v479
  %v562 = vpack.c.b16 %v482, %v481
  %v563 = vpack.c.b16 %v484, %v483
  %v564 = vpack.c.b16 %v486, %v485
  %v565 = vpack.c.b16 %v488, %v487
  %v566 = vpack.c.b16 %v490, %v489
  %v567 = vpack.c.b16 %v492, %v491
  %v568 = vpack.c.b16 %v494, %v493
  %v569 = vpack.c.b16 %v496, %v495
  %v570 = vpack.c.b16 %v498, %v497
  %643 = vmatprep.subr.bf16.mxu0 0
  %644 = vmatpush1.bf16.msra.mxu0 %v506
  %645 = vmatprep.subr.bf16.mxu0 0
  %646 = vmatpush1.bf16.msra.mxu0 %v505
  %647 = vmatprep.subr.bf16.mxu0 0
  %648 = vmatpush1.bf16.msra.mxu0 %v504
  %649 = vmatprep.subr.bf16.mxu0 0
  %650 = vmatpush1.bf16.msra.mxu0 %v503
  %651 = vmatprep.subr.bf16.mxu0 0
  %652 = vmatpush1.bf16.msra.mxu0 %v502
  %653 = vmatprep.subr.bf16.mxu0 0
  %654 = vmatpush1.bf16.msra.mxu0 %v501
  %655 = vmatprep.subr.bf16.mxu0 0
  %656 = vmatpush1.bf16.msra.mxu0 %v500
  %657 = vmatprep.subr.bf16.mxu0 0
  %658 = vmatpush1.bf16.msra.mxu0 %v499
  %659 = vmatprep.subr.bf16.mxu0 0
  %660 = vmatpush2.bf16.msra.mxu0 %v514
  %661 = vmatprep.subr.bf16.mxu0 0
  %662 = vmatpush2.bf16.msra.mxu0 %v513
  %663 = vmatprep.subr.bf16.mxu0 0
  %664 = vmatpush2.bf16.msra.mxu0 %v512
  %665 = vmatprep.subr.bf16.mxu0 0
  %666 = vmatpush2.bf16.msra.mxu0 %v511
  %667 = vmatprep.subr.bf16.mxu0 0
  %668 = vmatpush2.bf16.msra.mxu0 %v510
  %669 = vmatprep.subr.bf16.mxu0 0
  %670 = vmatpush2.bf16.msra.mxu0 %v509
  %671 = vmatprep.subr.bf16.mxu0 0
  %672 = vmatpush2.bf16.msra.mxu0 %v508
  %673 = vmatprep.subr.bf16.mxu0 0
  %674 = vmatpush2.bf16.msra.mxu0 %v507
  %675 = vmatprep.mubr.bf16.mxu0 %v194
  %676 = vmatmul.mubr.bf16.gmra.mxu0 %v193
  %v677 = vpop.f32.mrf.mxu0
  %v678 = vadd.f32 %v178, %v677
  %v679 = vpop.f32.mrf.mxu0
  %v680 = vpop.f32.mrf.mxu0
  %v681 = vpop.f32.mrf.mxu0
  %682 = vdwg.mxu0
  %683 = vmatprep.subr.bf16.mxu0 0
  %684 = vmatpush1.bf16.msra.mxu0 %v522
  %685 = vmatprep.subr.bf16.mxu0 0
  %686 = vmatpush1.bf16.msra.mxu0 %v521
  %687 = vmatprep.subr.bf16.mxu0 0
  %688 = vmatpush1.bf16.msra.mxu0 %v520
  %689 = vmatprep.subr.bf16.mxu0 0
  %690 = vmatpush1.bf16.msra.mxu0 %v519
  %691 = vmatprep.subr.bf16.mxu0 0
  %692 = vmatpush1.bf16.msra.mxu0 %v518
  %693 = vmatprep.subr.bf16.mxu0 0
  %694 = vmatpush1.bf16.msra.mxu0 %v517
  %695 = vmatprep.subr.bf16.mxu0 0
  %696 = vmatpush1.bf16.msra.mxu0 %v516
  %697 = vmatprep.subr.bf16.mxu0 0
  %698 = vmatpush1.bf16.msra.mxu0 %v515
  %699 = vmatprep.subr.bf16.mxu0 0
  %700 = vmatpush2.bf16.msra.mxu0 %v530
  %701 = vmatprep.subr.bf16.mxu0 0
  %702 = vmatpush2.bf16.msra.mxu0 %v529
  %703 = vmatprep.subr.bf16.mxu0 0
  %704 = vmatpush2.bf16.msra.mxu0 %v528
  %705 = vmatprep.subr.bf16.mxu0 0
  %706 = vmatpush2.bf16.msra.mxu0 %v527
  %707 = vmatprep.subr.bf16.mxu0 0
  %708 = vmatpush2.bf16.msra.mxu0 %v526
  %709 = vmatprep.subr.bf16.mxu0 0
  %710 = vmatpush2.bf16.msra.mxu0 %v525
  %711 = vmatprep.subr.bf16.mxu0 0
  %712 = vmatpush2.bf16.msra.mxu0 %v524
  %713 = vmatprep.subr.bf16.mxu0 0
  %714 = vmatpush2.bf16.msra.mxu0 %v523
  %715 = vmatprep.mubr.bf16.mxu0 %v196
  %716 = vmatmul.mubr.bf16.gmra.mxu0 %v195
  %v717 = vpop.f32.mrf.mxu0
  %v718 = vadd.f32 %v678, %v717
  %v719 = vpop.f32.mrf.mxu0
  %v720 = vpop.f32.mrf.mxu0
  %v721 = vpop.f32.mrf.mxu0
  %722 = vdwg.mxu0
  %723 = vmatprep.subr.bf16.mxu0 0
  %724 = vmatpush1.bf16.msra.mxu0 %v538
  %725 = vmatprep.subr.bf16.mxu0 0
  %726 = vmatpush1.bf16.msra.mxu0 %v537
  %727 = vmatprep.subr.bf16.mxu0 0
  %728 = vmatpush1.bf16.msra.mxu0 %v536
  %729 = vmatprep.subr.bf16.mxu0 0
  %730 = vmatpush1.bf16.msra.mxu0 %v535
  %731 = vmatprep.subr.bf16.mxu0 0
  %732 = vmatpush1.bf16.msra.mxu0 %v534
  %733 = vmatprep.subr.bf16.mxu0 0
  %734 = vmatpush1.bf16.msra.mxu0 %v533
  %735 = vmatprep.subr.bf16.mxu0 0
  %736 = vmatpush1.bf16.msra.mxu0 %v532
  %737 = vmatprep.subr.bf16.mxu0 0
  %738 = vmatpush1.bf16.msra.mxu0 %v531
  %739 = vmatprep.subr.bf16.mxu0 0
  %740 = vmatpush2.bf16.msra.mxu0 %v546
  %741 = vmatprep.subr.bf16.mxu0 0
  %742 = vmatpush2.bf16.msra.mxu0 %v545
  %743 = vmatprep.subr.bf16.mxu0 0
  %744 = vmatpush2.bf16.msra.mxu0 %v544
  %745 = vmatprep.subr.bf16.mxu0 0
  %746 = vmatpush2.bf16.msra.mxu0 %v543
  %747 = vmatprep.subr.bf16.mxu0 0
  %748 = vmatpush2.bf16.msra.mxu0 %v542
  %749 = vmatprep.subr.bf16.mxu0 0
  %750 = vmatpush2.bf16.msra.mxu0 %v541
  %751 = vmatprep.subr.bf16.mxu0 0
  %752 = vmatpush2.bf16.msra.mxu0 %v540
  %753 = vmatprep.subr.bf16.mxu0 0
  %754 = vmatpush2.bf16.msra.mxu0 %v539
  %755 = vmatprep.mubr.bf16.mxu0 %v198
  %756 = vmatmul.mubr.bf16.gmra.mxu0 %v197
  %v757 = vpop.f32.mrf.mxu0
  %v758 = vadd.f32 %v718, %v757
  %v759 = vpop.f32.mrf.mxu0
  %v760 = vpop.f32.mrf.mxu0
  %v761 = vpop.f32.mrf.mxu0
  %762 = vdwg.mxu0
  %763 = vmatprep.subr.bf16.mxu0 0
  %764 = vmatpush1.bf16.msra.mxu0 %v554
  %765 = vmatprep.subr.bf16.mxu0 0
  %766 = vmatpush1.bf16.msra.mxu0 %v553
  %767 = vmatprep.subr.bf16.mxu0 0
  %768 = vmatpush1.bf16.msra.mxu0 %v552
  %769 = vmatprep.subr.bf16.mxu0 0
  %770 = vmatpush1.bf16.msra.mxu0 %v551
  %771 = vmatprep.subr.bf16.mxu0 0
  %772 = vmatpush1.bf16.msra.mxu0 %v550
  %773 = vmatprep.subr.bf16.mxu0 0
  %774 = vmatpush1.bf16.msra.mxu0 %v549
  %775 = vmatprep.subr.bf16.mxu0 0
  %776 = vmatpush1.bf16.msra.mxu0 %v548
  %777 = vmatprep.subr.bf16.mxu0 0
  %778 = vmatpush1.bf16.msra.mxu0 %v547
  %779 = vmatprep.subr.bf16.mxu0 0
  %780 = vmatpush2.bf16.msra.mxu0 %v562
  %781 = vmatprep.subr.bf16.mxu0 0
  %782 = vmatpush2.bf16.msra.mxu0 %v561
  %783 = vmatprep.subr.bf16.mxu0 0
  %784 = vmatpush2.bf16.msra.mxu0 %v560
  %785 = vmatprep.subr.bf16.mxu0 0
  %786 = vmatpush2.bf16.msra.mxu0 %v559
  %787 = vmatprep.subr.bf16.mxu0 0
  %788 = vmatpush2.bf16.msra.mxu0 %v558
  %789 = vmatprep.subr.bf16.mxu0 0
  %790 = vmatpush2.bf16.msra.mxu0 %v557
  %791 = vmatprep.subr.bf16.mxu0 0
  %792 = vmatpush2.bf16.msra.mxu0 %v556
  %793 = vmatprep.subr.bf16.mxu0 0
  %794 = vmatpush2.bf16.msra.mxu0 %v555
  %795 = vmatprep.mubr.bf16.mxu0 %v200
  %796 = vmatmul.mubr.bf16.gmra.mxu0 %v199
  %v797 = vpop.f32.mrf.mxu0
  %v798 = vadd.f32 %v758, %v797
  %v799 = vpop.f32.mrf.mxu0
  %v800 = vpop.f32.mrf.mxu0
  %v801 = vpop.f32.mrf.mxu0
  %802 = vdwg.mxu0
  %803 = vmatprep.subr.bf16.mxu0 0
  %804 = vmatpush1.bf16.msra.mxu0 %v570
  %805 = vmatprep.subr.bf16.mxu0 0
  %806 = vmatpush1.bf16.msra.mxu0 %v569
  %807 = vmatprep.subr.bf16.mxu0 0
  %808 = vmatpush1.bf16.msra.mxu0 %v568
  %809 = vmatprep.subr.bf16.mxu0 0
  %810 = vmatpush1.bf16.msra.mxu0 %v567
  %811 = vmatprep.subr.bf16.mxu0 0
  %812 = vmatpush1.bf16.msra.mxu0 %v566
  %813 = vmatprep.subr.bf16.mxu0 0
  %814 = vmatpush1.bf16.msra.mxu0 %v565
  %815 = vmatprep.subr.bf16.mxu0 0
  %816 = vmatpush1.bf16.msra.mxu0 %v564
  %817 = vmatprep.subr.bf16.mxu0 0
  %818 = vmatpush1.bf16.msra.mxu0 %v563
  %819 = vmatprep.subr.bf16.mxu0 0
  %820 = vmatpush2.bf16.msra.mxu0 0
  %821 = vmatprep.subr.bf16.mxu0 0
  %822 = vmatpush2.bf16.msra.mxu0 0
  %823 = vmatprep.subr.bf16.mxu0 0
  %824 = vmatpush2.bf16.msra.mxu0 0
  %825 = vmatprep.subr.bf16.mxu0 0
  %826 = vmatpush2.bf16.msra.mxu0 0
  %827 = vmatprep.subr.bf16.mxu0 0
  %828 = vmatpush2.bf16.msra.mxu0 0
  %829 = vmatprep.subr.bf16.mxu0 0
  %830 = vmatpush2.bf16.msra.mxu0 0
  %831 = vmatprep.subr.bf16.mxu0 0
  %832 = vmatpush2.bf16.msra.mxu0 0
  %833 = vmatprep.subr.bf16.mxu0 0
  %834 = vmatpush2.bf16.msra.mxu0 0
  %835 = vmatprep.mubr.bf16.mxu0 0
  %836 = vmatmul.mubr.bf16.gmra.mxu0 %v201
  %v837 = vpop.f32.mrf.mxu0
  %v838 = vadd.f32 %v798, %v837
  %v839 = vpop.f32.mrf.mxu0
  %v840 = vpop.f32.mrf.mxu0
  %v841 = vpop.f32.mrf.mxu0
  %842 = vdwg.mxu0
  %vm843 = vcmp.gt.f32.partialorder %v838, 0.0
  %v844 = vmul.f32 %v838, 0.2
  %v845 = vsel %vm843, %v838, %v844
  %v846 = vpack.c.bf16 %v845, %v845
  %v847 = vld [vmem:[%s2] sm:$0xf]
  %v848 = vld [vmem:[%s2 + $0x4] sm:$0xf]
  %v849 = vld [vmem:[%s2 + $0x8] sm:$0xf]
  %v850 = vld [vmem:[%s2 + $0xc] sm:$0xf]
  %v851 = vld [vmem:[%s2 + $0x10] sm:$0xf]
  %v852 = vld [vmem:[%s2 + $0x14] sm:$0xf]
  %v853 = vld [vmem:[%s2 + $0x18] sm:$0xf]
  %v854 = vld [vmem:[%s2 + $0x1c] sm:$0xf]
  %v855 = vld [vmem:[%s2 + $0x20] sm:$0xf]
  %v856 = vld [vmem:[%s2 + $0x24] sm:$0xf]
  %v857 = vld [vmem:[%s2 + $0x28] sm:$0xf]
  %v858 = vld [vmem:[%s2 + $0x2c] sm:$0xf]
  %v859 = vld [vmem:[%s2 + $0x30] sm:$0xf]
  %v860 = vld [vmem:[%s2 + $0x34] sm:$0xf]
  %v861 = vld [vmem:[%s2 + $0x38] sm:$0xf]
  %v862 = vld [vmem:[%s2 + $0x3c] sm:$0xf]
  %s863 = scalar_lea.vmem %s2, 64
  %v864 = vld [vmem:[%s863] sm:$0xf]
  %v865 = vld [vmem:[%s863 + $0x4] sm:$0xf]
  %v866 = vld [vmem:[%s863 + $0x8] sm:$0xf]
  %v867 = vld [vmem:[%s863 + $0xc] sm:$0xf]
  %v868 = vld [vmem:[%s863 + $0x10] sm:$0xf]
  %v869 = vld [vmem:[%s863 + $0x14] sm:$0xf]
  %v870 = vld [vmem:[%s863 + $0x18] sm:$0xf]
  %v871 = vld [vmem:[%s863 + $0x1c] sm:$0xf]
  %v872 = vld [vmem:[%s863 + $0x20] sm:$0xf]
  %v873 = vld [vmem:[%s863 + $0x24] sm:$0xf]
  %v874 = vld [vmem:[%s863 + $0x28] sm:$0xf]
  %v875 = vld [vmem:[%s863 + $0x2c] sm:$0xf]
  %v876 = vld [vmem:[%s863 + $0x30] sm:$0xf]
  %v877 = vld [vmem:[%s863 + $0x34] sm:$0xf]
  %v878 = vld [vmem:[%s863 + $0x38] sm:$0xf]
  %v879 = vld [vmem:[%s863 + $0x3c] sm:$0xf]
  %v881 = vrot.slane %v846, 1
  %v899 = vunpack.c.l.b16 %v864
  %v900 = vunpack.c.l.b16 %v865
  %v901 = vunpack.c.l.b16 %v866
  %v902 = vunpack.c.l.b16 %v867
  %v903 = vunpack.c.l.b16 %v868
  %v904 = vunpack.c.l.b16 %v869
  %v905 = vunpack.c.l.b16 %v870
  %v906 = vunpack.c.l.b16 %v871
  %v907 = vunpack.c.l.b16 %v872
  %v908 = vunpack.c.l.b16 %v873
  %v909 = vunpack.c.l.b16 %v874
  %v910 = vunpack.c.l.b16 %v875
  %v911 = vunpack.c.l.b16 %v876
  %v912 = vunpack.c.l.b16 %v877
  %v913 = vunpack.c.l.b16 %v878
  %v914 = vunpack.c.l.b16 %v879
  %v915 = vpack.c.b16 %v900, %v899
  %v916 = vpack.c.b16 %v902, %v901
  %v917 = vpack.c.b16 %v904, %v903
  %v918 = vpack.c.b16 %v906, %v905
  %v919 = vpack.c.b16 %v908, %v907
  %v920 = vpack.c.b16 %v910, %v909
  %v921 = vpack.c.b16 %v912, %v911
  %v922 = vpack.c.b16 %v914, %v913
  %931 = vmatprep.subr.bf16.mxu0 0
  %932 = vmatpush1.bf16.msra.mxu0 %v922
  %933 = vmatprep.subr.bf16.mxu0 0
  %934 = vmatpush1.bf16.msra.mxu0 %v921
  %935 = vmatprep.subr.bf16.mxu0 0
  %936 = vmatpush1.bf16.msra.mxu0 %v920
  %937 = vmatprep.subr.bf16.mxu0 0
  %938 = vmatpush1.bf16.msra.mxu0 %v919
  %939 = vmatprep.subr.bf16.mxu0 0
  %940 = vmatpush1.bf16.msra.mxu0 %v918
  %941 = vmatprep.subr.bf16.mxu0 0
  %942 = vmatpush1.bf16.msra.mxu0 %v917
  %943 = vmatprep.subr.bf16.mxu0 0
  %944 = vmatpush1.bf16.msra.mxu0 %v916
  %945 = vmatprep.subr.bf16.mxu0 0
  %946 = vmatpush1.bf16.msra.mxu0 %v915
  %947 = vmatprep.subr.bf16.mxu0 0
  %948 = vmatpush2.bf16.msra.mxu0 0
  %949 = vmatprep.subr.bf16.mxu0 0
  %950 = vmatpush2.bf16.msra.mxu0 0
  %951 = vmatprep.subr.bf16.mxu0 0
  %952 = vmatpush2.bf16.msra.mxu0 0
  %953 = vmatprep.subr.bf16.mxu0 0
  %954 = vmatpush2.bf16.msra.mxu0 0
  %955 = vmatprep.subr.bf16.mxu0 0
  %956 = vmatpush2.bf16.msra.mxu0 0
  %957 = vmatprep.subr.bf16.mxu0 0
  %958 = vmatpush2.bf16.msra.mxu0 0
  %959 = vmatprep.subr.bf16.mxu0 0
  %960 = vmatpush2.bf16.msra.mxu0 0
  %961 = vmatprep.subr.bf16.mxu0 0
  %962 = vmatpush2.bf16.msra.mxu0 0
  %963 = vmatprep.mubr.bf16.mxu0 0
  %964 = vmatmul.mubr.bf16.gmra.mxu0 %v881
  %v965 = vpop.f32.mrf.mxu0
  %v966 = vadd.f32 0.0, %v965
  %v967 = vpop.f32.mrf.mxu0
  %v968 = vpop.f32.mrf.mxu0
  %v969 = vpop.f32.mrf.mxu0
  %970 = vdwg.mxu0
  %v987 = vunpack.c.l.b16 %v847
  %v988 = vunpack.c.l.b16 %v848
  %v989 = vunpack.c.l.b16 %v849
  %v990 = vunpack.c.l.b16 %v850
  %v991 = vunpack.c.l.b16 %v851
  %v992 = vunpack.c.l.b16 %v852
  %v993 = vunpack.c.l.b16 %v853
  %v994 = vunpack.c.l.b16 %v854
  %v995 = vunpack.c.l.b16 %v855
  %v996 = vunpack.c.l.b16 %v856
  %v997 = vunpack.c.l.b16 %v857
  %v998 = vunpack.c.l.b16 %v858
  %v999 = vunpack.c.l.b16 %v859
  %v1000 = vunpack.c.l.b16 %v860
  %v1001 = vunpack.c.l.b16 %v861
  %v1002 = vunpack.c.l.b16 %v862
  %v1003 = vpack.c.b16 %v988, %v987
  %v1004 = vpack.c.b16 %v990, %v989
  %v1005 = vpack.c.b16 %v992, %v991
  %v1006 = vpack.c.b16 %v994, %v993
  %v1007 = vpack.c.b16 %v996, %v995
  %v1008 = vpack.c.b16 %v998, %v997
  %v1009 = vpack.c.b16 %v1000, %v999
  %v1010 = vpack.c.b16 %v1002, %v1001
  %1019 = vmatprep.subr.bf16.mxu0 0
  %1020 = vmatpush1.bf16.msra.mxu0 %v1010
  %1021 = vmatprep.subr.bf16.mxu0 0
  %1022 = vmatpush1.bf16.msra.mxu0 %v1009
  %1023 = vmatprep.subr.bf16.mxu0 0
  %1024 = vmatpush1.bf16.msra.mxu0 %v1008
  %1025 = vmatprep.subr.bf16.mxu0 0
  %1026 = vmatpush1.bf16.msra.mxu0 %v1007
  %1027 = vmatprep.subr.bf16.mxu0 0
  %1028 = vmatpush1.bf16.msra.mxu0 %v1006
  %1029 = vmatprep.subr.bf16.mxu0 0
  %1030 = vmatpush1.bf16.msra.mxu0 %v1005
  %1031 = vmatprep.subr.bf16.mxu0 0
  %1032 = vmatpush1.bf16.msra.mxu0 %v1004
  %1033 = vmatprep.subr.bf16.mxu0 0
  %1034 = vmatpush1.bf16.msra.mxu0 %v1003
  %1035 = vmatprep.subr.bf16.mxu0 0
  %1036 = vmatpush2.bf16.msra.mxu0 0
  %1037 = vmatprep.subr.bf16.mxu0 0
  %1038 = vmatpush2.bf16.msra.mxu0 0
  %1039 = vmatprep.subr.bf16.mxu0 0
  %1040 = vmatpush2.bf16.msra.mxu0 0
  %1041 = vmatprep.subr.bf16.mxu0 0
  %1042 = vmatpush2.bf16.msra.mxu0 0
  %1043 = vmatprep.subr.bf16.mxu0 0
  %1044 = vmatpush2.bf16.msra.mxu0 0
  %1045 = vmatprep.subr.bf16.mxu0 0
  %1046 = vmatpush2.bf16.msra.mxu0 0
  %1047 = vmatprep.subr.bf16.mxu0 0
  %1048 = vmatpush2.bf16.msra.mxu0 0
  %1049 = vmatprep.subr.bf16.mxu0 0
  %1050 = vmatpush2.bf16.msra.mxu0 0
  %1051 = vmatprep.mubr.bf16.mxu0 0
  %1052 = vmatmul.mubr.bf16.gmra.mxu0 %v846
  %v1053 = vpop.f32.mrf.mxu0
  %v1054 = vadd.f32 %v966, %v1053
  %v1055 = vpop.f32.mrf.mxu0
  %v1056 = vpop.f32.mrf.mxu0
  %v1057 = vpop.f32.mrf.mxu0
  %1058 = vdwg.mxu0
  %s1059 = scalar_lea.vmem %s2, 128
  %v1060 = vld [vmem:[%s1059] sm:$0xf]
  %v1061 = vld [vmem:[%s1059 + $0x4] sm:$0xf]
  %v1062 = vld [vmem:[%s1059 + $0x8] sm:$0xf]
  %v1063 = vld [vmem:[%s1059 + $0xc] sm:$0xf]
  %v1064 = vld [vmem:[%s1059 + $0x10] sm:$0xf]
  %v1065 = vld [vmem:[%s1059 + $0x14] sm:$0xf]
  %v1066 = vld [vmem:[%s1059 + $0x18] sm:$0xf]
  %v1067 = vld [vmem:[%s1059 + $0x1c] sm:$0xf]
  %v1068 = vld [vmem:[%s1059 + $0x20] sm:$0xf]
  %v1069 = vld [vmem:[%s1059 + $0x24] sm:$0xf]
  %v1070 = vld [vmem:[%s1059 + $0x28] sm:$0xf]
  %v1071 = vld [vmem:[%s1059 + $0x2c] sm:$0xf]
  %v1072 = vld [vmem:[%s1059 + $0x30] sm:$0xf]
  %v1073 = vld [vmem:[%s1059 + $0x34] sm:$0xf]
  %v1074 = vld [vmem:[%s1059 + $0x38] sm:$0xf]
  %v1075 = vld [vmem:[%s1059 + $0x3c] sm:$0xf]
  %v1076 = vrot.slane %v846, 2
  %v1094 = vunpack.c.l.b16 %v1060
  %v1095 = vunpack.c.l.b16 %v1061
  %v1096 = vunpack.c.l.b16 %v1062
  %v1097 = vunpack.c.l.b16 %v1063
  %v1098 = vunpack.c.l.b16 %v1064
  %v1099 = vunpack.c.l.b16 %v1065
  %v1100 = vunpack.c.l.b16 %v1066
  %v1101 = vunpack.c.l.b16 %v1067
  %v1102 = vunpack.c.l.b16 %v1068
  %v1103 = vunpack.c.l.b16 %v1069
  %v1104 = vunpack.c.l.b16 %v1070
  %v1105 = vunpack.c.l.b16 %v1071
  %v1106 = vunpack.c.l.b16 %v1072
  %v1107 = vunpack.c.l.b16 %v1073
  %v1108 = vunpack.c.l.b16 %v1074
  %v1109 = vunpack.c.l.b16 %v1075
  %v1110 = vpack.c.b16 %v1095, %v1094
  %v1111 = vpack.c.b16 %v1097, %v1096
  %v1112 = vpack.c.b16 %v1099, %v1098
  %v1113 = vpack.c.b16 %v1101, %v1100
  %v1114 = vpack.c.b16 %v1103, %v1102
  %v1115 = vpack.c.b16 %v1105, %v1104
  %v1116 = vpack.c.b16 %v1107, %v1106
  %v1117 = vpack.c.b16 %v1109, %v1108
  %1126 = vmatprep.subr.bf16.mxu0 0
  %1127 = vmatpush1.bf16.msra.mxu0 %v1117
  %1128 = vmatprep.subr.bf16.mxu0 0
  %1129 = vmatpush1.bf16.msra.mxu0 %v1116
  %1130 = vmatprep.subr.bf16.mxu0 0
  %1131 = vmatpush1.bf16.msra.mxu0 %v1115
  %1132 = vmatprep.subr.bf16.mxu0 0
  %1133 = vmatpush1.bf16.msra.mxu0 %v1114
  %1134 = vmatprep.subr.bf16.mxu0 0
  %1135 = vmatpush1.bf16.msra.mxu0 %v1113
  %1136 = vmatprep.subr.bf16.mxu0 0
  %1137 = vmatpush1.bf16.msra.mxu0 %v1112
  %1138 = vmatprep.subr.bf16.mxu0 0
  %1139 = vmatpush1.bf16.msra.mxu0 %v1111
  %1140 = vmatprep.subr.bf16.mxu0 0
  %1141 = vmatpush1.bf16.msra.mxu0 %v1110
  %1142 = vmatprep.subr.bf16.mxu0 0
  %1143 = vmatpush2.bf16.msra.mxu0 0
  %1144 = vmatprep.subr.bf16.mxu0 0
  %1145 = vmatpush2.bf16.msra.mxu0 0
  %1146 = vmatprep.subr.bf16.mxu0 0
  %1147 = vmatpush2.bf16.msra.mxu0 0
  %1148 = vmatprep.subr.bf16.mxu0 0
  %1149 = vmatpush2.bf16.msra.mxu0 0
  %1150 = vmatprep.subr.bf16.mxu0 0
  %1151 = vmatpush2.bf16.msra.mxu0 0
  %1152 = vmatprep.subr.bf16.mxu0 0
  %1153 = vmatpush2.bf16.msra.mxu0 0
  %1154 = vmatprep.subr.bf16.mxu0 0
  %1155 = vmatpush2.bf16.msra.mxu0 0
  %1156 = vmatprep.subr.bf16.mxu0 0
  %1157 = vmatpush2.bf16.msra.mxu0 0
  %1158 = vmatprep.mubr.bf16.mxu0 0
  %1159 = vmatmul.mubr.bf16.gmra.mxu0 %v1076
  %v1160 = vpop.f32.mrf.mxu0
  %v1161 = vadd.f32 0.0, %v1160
  %v1162 = vpop.f32.mrf.mxu0
  %v1163 = vpop.f32.mrf.mxu0
  %v1164 = vpop.f32.mrf.mxu0
  %1165 = vdwg.mxu0
  %v1166 = vadd.f32 %v1054, %v1161
  %s1167 = scalar_lea.vmem %s2, 192
  %v1168 = vld [vmem:[%s1167] sm:$0xf]
  %v1169 = vld [vmem:[%s1167 + $0x4] sm:$0xf]
  %v1170 = vld [vmem:[%s1167 + $0x8] sm:$0xf]
  %v1171 = vld [vmem:[%s1167 + $0xc] sm:$0xf]
  %v1172 = vld [vmem:[%s1167 + $0x10] sm:$0xf]
  %v1173 = vld [vmem:[%s1167 + $0x14] sm:$0xf]
  %v1174 = vld [vmem:[%s1167 + $0x18] sm:$0xf]
  %v1175 = vld [vmem:[%s1167 + $0x1c] sm:$0xf]
  %v1176 = vld [vmem:[%s1167 + $0x20] sm:$0xf]
  %v1177 = vld [vmem:[%s1167 + $0x24] sm:$0xf]
  %v1178 = vld [vmem:[%s1167 + $0x28] sm:$0xf]
  %v1179 = vld [vmem:[%s1167 + $0x2c] sm:$0xf]
  %v1180 = vld [vmem:[%s1167 + $0x30] sm:$0xf]
  %v1181 = vld [vmem:[%s1167 + $0x34] sm:$0xf]
  %v1182 = vld [vmem:[%s1167 + $0x38] sm:$0xf]
  %v1183 = vld [vmem:[%s1167 + $0x3c] sm:$0xf]
  %v1184 = vrot.slane %v846, 3
  %v1202 = vunpack.c.l.b16 %v1168
  %v1203 = vunpack.c.l.b16 %v1169
  %v1204 = vunpack.c.l.b16 %v1170
  %v1205 = vunpack.c.l.b16 %v1171
  %v1206 = vunpack.c.l.b16 %v1172
  %v1207 = vunpack.c.l.b16 %v1173
  %v1208 = vunpack.c.l.b16 %v1174
  %v1209 = vunpack.c.l.b16 %v1175
  %v1210 = vunpack.c.l.b16 %v1176
  %v1211 = vunpack.c.l.b16 %v1177
  %v1212 = vunpack.c.l.b16 %v1178
  %v1213 = vunpack.c.l.b16 %v1179
  %v1214 = vunpack.c.l.b16 %v1180
  %v1215 = vunpack.c.l.b16 %v1181
  %v1216 = vunpack.c.l.b16 %v1182
  %v1217 = vunpack.c.l.b16 %v1183
  %v1218 = vpack.c.b16 %v1203, %v1202
  %v1219 = vpack.c.b16 %v1205, %v1204
  %v1220 = vpack.c.b16 %v1207, %v1206
  %v1221 = vpack.c.b16 %v1209, %v1208
  %v1222 = vpack.c.b16 %v1211, %v1210
  %v1223 = vpack.c.b16 %v1213, %v1212
  %v1224 = vpack.c.b16 %v1215, %v1214
  %v1225 = vpack.c.b16 %v1217, %v1216
  %1234 = vmatprep.subr.bf16.mxu0 0
  %1235 = vmatpush1.bf16.msra.mxu0 %v1225
  %1236 = vmatprep.subr.bf16.mxu0 0
  %1237 = vmatpush1.bf16.msra.mxu0 %v1224
  %1238 = vmatprep.subr.bf16.mxu0 0
  %1239 = vmatpush1.bf16.msra.mxu0 %v1223
  %1240 = vmatprep.subr.bf16.mxu0 0
  %1241 = vmatpush1.bf16.msra.mxu0 %v1222
  %1242 = vmatprep.subr.bf16.mxu0 0
  %1243 = vmatpush1.bf16.msra.mxu0 %v1221
  %1244 = vmatprep.subr.bf16.mxu0 0
  %1245 = vmatpush1.bf16.msra.mxu0 %v1220
  %1246 = vmatprep.subr.bf16.mxu0 0
  %1247 = vmatpush1.bf16.msra.mxu0 %v1219
  %1248 = vmatprep.subr.bf16.mxu0 0
  %1249 = vmatpush1.bf16.msra.mxu0 %v1218
  %1250 = vmatprep.subr.bf16.mxu0 0
  %1251 = vmatpush2.bf16.msra.mxu0 0
  %1252 = vmatprep.subr.bf16.mxu0 0
  %1253 = vmatpush2.bf16.msra.mxu0 0
  %1254 = vmatprep.subr.bf16.mxu0 0
  %1255 = vmatpush2.bf16.msra.mxu0 0
  %1256 = vmatprep.subr.bf16.mxu0 0
  %1257 = vmatpush2.bf16.msra.mxu0 0
  %1258 = vmatprep.subr.bf16.mxu0 0
  %1259 = vmatpush2.bf16.msra.mxu0 0
  %1260 = vmatprep.subr.bf16.mxu0 0
  %1261 = vmatpush2.bf16.msra.mxu0 0
  %1262 = vmatprep.subr.bf16.mxu0 0
  %1263 = vmatpush2.bf16.msra.mxu0 0
  %1264 = vmatprep.subr.bf16.mxu0 0
  %1265 = vmatpush2.bf16.msra.mxu0 0
  %1266 = vmatprep.mubr.bf16.mxu0 0
  %1267 = vmatmul.mubr.bf16.gmra.mxu0 %v1184
  %v1268 = vpop.f32.mrf.mxu0
  %v1269 = vadd.f32 0.0, %v1268
  %v1270 = vpop.f32.mrf.mxu0
  %v1271 = vpop.f32.mrf.mxu0
  %v1272 = vpop.f32.mrf.mxu0
  %1273 = vdwg.mxu0
  %v1274 = vadd.f32 %v1166, %v1269
  %v1275 = vlaneseq
  %v1276 = vshrl.u32 %v1275, 7
  %v1277 = vsub.s32 1, %v1276
  %v1278 = vrot.slane %v24, %v1277
  %v1279 = vadd.f32 %v1274, %v1278
  %v1280 = vpack.c.bf16 %v1279, %v1279
  %v1281 = vld [vmem:[%s3] sm:$0xf]
  %v1282 = vld [vmem:[%s3 + $0x4] sm:$0xf]
  %v1283 = vld [vmem:[%s3 + $0x8] sm:$0xf]
  %v1284 = vld [vmem:[%s3 + $0xc] sm:$0xf]
  %v1285 = vld [vmem:[%s3 + $0x10] sm:$0xf]
  %v1286 = vld [vmem:[%s3 + $0x14] sm:$0xf]
  %v1287 = vld [vmem:[%s3 + $0x18] sm:$0xf]
  %v1288 = vld [vmem:[%s3 + $0x1c] sm:$0xf]
  %v1289 = vld [vmem:[%s3 + $0x20] sm:$0xf]
  %v1290 = vld [vmem:[%s3 + $0x24] sm:$0xf]
  %v1291 = vld [vmem:[%s3 + $0x28] sm:$0xf]
  %v1292 = vld [vmem:[%s3 + $0x2c] sm:$0xf]
  %v1293 = vld [vmem:[%s3 + $0x30] sm:$0xf]
  %v1294 = vld [vmem:[%s3 + $0x34] sm:$0xf]
  %v1295 = vld [vmem:[%s3 + $0x38] sm:$0xf]
  %v1296 = vld [vmem:[%s3 + $0x3c] sm:$0xf]
  %v1297 = vlaneseq
  %v1298 = vshrl.u32 %v1297, 7
  %v1299 = vsub.s32 2, %v1298
  %v1300 = vrot.slane %v24, %v1299
  %v1317 = vunpack.c.l.b16 %v1281
  %v1318 = vunpack.c.l.b16 %v1282
  %v1319 = vunpack.c.l.b16 %v1283
  %v1320 = vunpack.c.l.b16 %v1284
  %v1321 = vunpack.c.l.b16 %v1285
  %v1322 = vunpack.c.l.b16 %v1286
  %v1323 = vunpack.c.l.b16 %v1287
  %v1324 = vunpack.c.l.b16 %v1288
  %v1325 = vunpack.c.l.b16 %v1289
  %v1326 = vunpack.c.l.b16 %v1290
  %v1327 = vunpack.c.l.b16 %v1291
  %v1328 = vunpack.c.l.b16 %v1292
  %v1329 = vunpack.c.l.b16 %v1293
  %v1330 = vunpack.c.l.b16 %v1294
  %v1331 = vunpack.c.l.b16 %v1295
  %v1332 = vunpack.c.l.b16 %v1296
  %v1333 = vpack.c.b16 %v1318, %v1317
  %v1334 = vpack.c.b16 %v1320, %v1319
  %v1335 = vpack.c.b16 %v1322, %v1321
  %v1336 = vpack.c.b16 %v1324, %v1323
  %v1337 = vpack.c.b16 %v1326, %v1325
  %v1338 = vpack.c.b16 %v1328, %v1327
  %v1339 = vpack.c.b16 %v1330, %v1329
  %v1340 = vpack.c.b16 %v1332, %v1331
  %1349 = vmatprep.subr.bf16.mxu0 0
  %1350 = vmatpush1.bf16.msra.mxu0 %v1340
  %1351 = vmatprep.subr.bf16.mxu0 0
  %1352 = vmatpush1.bf16.msra.mxu0 %v1339
  %1353 = vmatprep.subr.bf16.mxu0 0
  %1354 = vmatpush1.bf16.msra.mxu0 %v1338
  %1355 = vmatprep.subr.bf16.mxu0 0
  %1356 = vmatpush1.bf16.msra.mxu0 %v1337
  %1357 = vmatprep.subr.bf16.mxu0 0
  %1358 = vmatpush1.bf16.msra.mxu0 %v1336
  %1359 = vmatprep.subr.bf16.mxu0 0
  %1360 = vmatpush1.bf16.msra.mxu0 %v1335
  %1361 = vmatprep.subr.bf16.mxu0 0
  %1362 = vmatpush1.bf16.msra.mxu0 %v1334
  %1363 = vmatprep.subr.bf16.mxu0 0
  %1364 = vmatpush1.bf16.msra.mxu0 %v1333
  %1365 = vmatprep.subr.bf16.mxu0 0
  %1366 = vmatpush2.bf16.msra.mxu0 0
  %1367 = vmatprep.subr.bf16.mxu0 0
  %1368 = vmatpush2.bf16.msra.mxu0 0
  %1369 = vmatprep.subr.bf16.mxu0 0
  %1370 = vmatpush2.bf16.msra.mxu0 0
  %1371 = vmatprep.subr.bf16.mxu0 0
  %1372 = vmatpush2.bf16.msra.mxu0 0
  %1373 = vmatprep.subr.bf16.mxu0 0
  %1374 = vmatpush2.bf16.msra.mxu0 0
  %1375 = vmatprep.subr.bf16.mxu0 0
  %1376 = vmatpush2.bf16.msra.mxu0 0
  %1377 = vmatprep.subr.bf16.mxu0 0
  %1378 = vmatpush2.bf16.msra.mxu0 0
  %1379 = vmatprep.subr.bf16.mxu0 0
  %1380 = vmatpush2.bf16.msra.mxu0 0
  %1381 = vmatprep.mubr.bf16.mxu0 0
  %1382 = vmatmul.mubr.bf16.gmra.mxu0 %v1280
  %v1383 = vpop.f32.mrf.mxu0
  %v1384 = vadd.f32 %v1300, %v1383
  %v1385 = vpop.f32.mrf.mxu0
  %v1386 = vpop.f32.mrf.mxu0
  %v1387 = vpop.f32.mrf.mxu0
  %1388 = vdwg.mxu0
  %vm1389 = vcmp.gt.f32.partialorder %v1384, 0.0
  %v1390 = vmul.f32 %v1384, 0.2
  %v1391 = vsel %vm1389, %v1384, %v1390
  %v1392 = vpack.c.bf16 %v1391, %v1391
  %s1393 = scalar_lea.vmem %s3, 320
  %v1394 = vld [vmem:[%s1393] sm:$0xf]
  %v1395 = vld [vmem:[%s1393 + $0x4] sm:$0xf]
  %v1396 = vld [vmem:[%s1393 + $0x8] sm:$0xf]
  %v1397 = vld [vmem:[%s1393 + $0xc] sm:$0xf]
  %v1398 = vld [vmem:[%s1393 + $0x10] sm:$0xf]
  %v1399 = vld [vmem:[%s1393 + $0x14] sm:$0xf]
  %v1400 = vld [vmem:[%s1393 + $0x18] sm:$0xf]
  %v1401 = vld [vmem:[%s1393 + $0x1c] sm:$0xf]
  %v1402 = vld [vmem:[%s1393 + $0x20] sm:$0xf]
  %v1403 = vld [vmem:[%s1393 + $0x24] sm:$0xf]
  %v1404 = vld [vmem:[%s1393 + $0x28] sm:$0xf]
  %v1405 = vld [vmem:[%s1393 + $0x2c] sm:$0xf]
  %v1406 = vld [vmem:[%s1393 + $0x30] sm:$0xf]
  %v1407 = vld [vmem:[%s1393 + $0x34] sm:$0xf]
  %v1408 = vld [vmem:[%s1393 + $0x38] sm:$0xf]
  %v1409 = vld [vmem:[%s1393 + $0x3c] sm:$0xf]
  %v1410 = vlaneseq
  %v1411 = vshrl.u32 %v1410, 7
  %v1412 = vsub.s32 7, %v1411
  %v1413 = vrot.slane %v24, %v1412
  %v1430 = vunpack.c.l.b16 %v1394
  %v1431 = vunpack.c.l.b16 %v1395
  %v1432 = vunpack.c.l.b16 %v1396
  %v1433 = vunpack.c.l.b16 %v1397
  %v1434 = vunpack.c.l.b16 %v1398
  %v1435 = vunpack.c.l.b16 %v1399
  %v1436 = vunpack.c.l.b16 %v1400
  %v1437 = vunpack.c.l.b16 %v1401
  %v1438 = vunpack.c.l.b16 %v1402
  %v1439 = vunpack.c.l.b16 %v1403
  %v1440 = vunpack.c.l.b16 %v1404
  %v1441 = vunpack.c.l.b16 %v1405
  %v1442 = vunpack.c.l.b16 %v1406
  %v1443 = vunpack.c.l.b16 %v1407
  %v1444 = vunpack.c.l.b16 %v1408
  %v1445 = vunpack.c.l.b16 %v1409
  %v1446 = vpack.c.b16 %v1431, %v1430
  %v1447 = vpack.c.b16 %v1433, %v1432
  %v1448 = vpack.c.b16 %v1435, %v1434
  %v1449 = vpack.c.b16 %v1437, %v1436
  %v1450 = vpack.c.b16 %v1439, %v1438
  %v1451 = vpack.c.b16 %v1441, %v1440
  %v1452 = vpack.c.b16 %v1443, %v1442
  %v1453 = vpack.c.b16 %v1445, %v1444
  %1462 = vmatprep.subr.bf16.mxu0 0
  %1463 = vmatpush1.bf16.msra.mxu0 %v1453
  %1464 = vmatprep.subr.bf16.mxu0 0
  %1465 = vmatpush1.bf16.msra.mxu0 %v1452
  %1466 = vmatprep.subr.bf16.mxu0 0
  %1467 = vmatpush1.bf16.msra.mxu0 %v1451
  %1468 = vmatprep.subr.bf16.mxu0 0
  %1469 = vmatpush1.bf16.msra.mxu0 %v1450
  %1470 = vmatprep.subr.bf16.mxu0 0
  %1471 = vmatpush1.bf16.msra.mxu0 %v1449
  %1472 = vmatprep.subr.bf16.mxu0 0
  %1473 = vmatpush1.bf16.msra.mxu0 %v1448
  %1474 = vmatprep.subr.bf16.mxu0 0
  %1475 = vmatpush1.bf16.msra.mxu0 %v1447
  %1476 = vmatprep.subr.bf16.mxu0 0
  %1477 = vmatpush1.bf16.msra.mxu0 %v1446
  %1478 = vmatprep.subr.bf16.mxu0 0
  %1479 = vmatpush2.bf16.msra.mxu0 0
  %1480 = vmatprep.subr.bf16.mxu0 0
  %1481 = vmatpush2.bf16.msra.mxu0 0
  %1482 = vmatprep.subr.bf16.mxu0 0
  %1483 = vmatpush2.bf16.msra.mxu0 0
  %1484 = vmatprep.subr.bf16.mxu0 0
  %1485 = vmatpush2.bf16.msra.mxu0 0
  %1486 = vmatprep.subr.bf16.mxu0 0
  %1487 = vmatpush2.bf16.msra.mxu0 0
  %1488 = vmatprep.subr.bf16.mxu0 0
  %1489 = vmatpush2.bf16.msra.mxu0 0
  %1490 = vmatprep.subr.bf16.mxu0 0
  %1491 = vmatpush2.bf16.msra.mxu0 0
  %1492 = vmatprep.subr.bf16.mxu0 0
  %1493 = vmatpush2.bf16.msra.mxu0 0
  %1494 = vmatprep.mubr.bf16.mxu0 0
  %1495 = vmatmul.mubr.bf16.gmra.mxu0 %v1392
  %v1496 = vpop.f32.mrf.mxu0
  %v1497 = vadd.f32 %v1413, %v1496
  %v1498 = vpop.f32.mrf.mxu0
  %v1499 = vpop.f32.mrf.mxu0
  %v1500 = vpop.f32.mrf.mxu0
  %1501 = vdwg.mxu0
  %v1502 = vadd.f32 %v1497, %v1279
  %v1503 = vpack.c.bf16 %v1502, %v1502
  %s1504 = scalar_lea.vmem %s3, 64
  %v1505 = vld [vmem:[%s1504] sm:$0xf]
  %v1506 = vld [vmem:[%s1504 + $0x4] sm:$0xf]
  %v1507 = vld [vmem:[%s1504 + $0x8] sm:$0xf]
  %v1508 = vld [vmem:[%s1504 + $0xc] sm:$0xf]
  %v1509 = vld [vmem:[%s1504 + $0x10] sm:$0xf]
  %v1510 = vld [vmem:[%s1504 + $0x14] sm:$0xf]
  %v1511 = vld [vmem:[%s1504 + $0x18] sm:$0xf]
  %v1512 = vld [vmem:[%s1504 + $0x1c] sm:$0xf]
  %v1513 = vld [vmem:[%s1504 + $0x20] sm:$0xf]
  %v1514 = vld [vmem:[%s1504 + $0x24] sm:$0xf]
  %v1515 = vld [vmem:[%s1504 + $0x28] sm:$0xf]
  %v1516 = vld [vmem:[%s1504 + $0x2c] sm:$0xf]
  %v1517 = vld [vmem:[%s1504 + $0x30] sm:$0xf]
  %v1518 = vld [vmem:[%s1504 + $0x34] sm:$0xf]
  %v1519 = vld [vmem:[%s1504 + $0x38] sm:$0xf]
  %v1520 = vld [vmem:[%s1504 + $0x3c] sm:$0xf]
  %v1521 = vlaneseq
  %v1522 = vshrl.u32 %v1521, 7
  %v1523 = vsub.s32 3, %v1522
  %v1524 = vrot.slane %v24, %v1523
  %v1541 = vunpack.c.l.b16 %v1505
  %v1542 = vunpack.c.l.b16 %v1506
  %v1543 = vunpack.c.l.b16 %v1507
  %v1544 = vunpack.c.l.b16 %v1508
  %v1545 = vunpack.c.l.b16 %v1509
  %v1546 = vunpack.c.l.b16 %v1510
  %v1547 = vunpack.c.l.b16 %v1511
  %v1548 = vunpack.c.l.b16 %v1512
  %v1549 = vunpack.c.l.b16 %v1513
  %v1550 = vunpack.c.l.b16 %v1514
  %v1551 = vunpack.c.l.b16 %v1515
  %v1552 = vunpack.c.l.b16 %v1516
  %v1553 = vunpack.c.l.b16 %v1517
  %v1554 = vunpack.c.l.b16 %v1518
  %v1555 = vunpack.c.l.b16 %v1519
  %v1556 = vunpack.c.l.b16 %v1520
  %v1557 = vpack.c.b16 %v1542, %v1541
  %v1558 = vpack.c.b16 %v1544, %v1543
  %v1559 = vpack.c.b16 %v1546, %v1545
  %v1560 = vpack.c.b16 %v1548, %v1547
  %v1561 = vpack.c.b16 %v1550, %v1549
  %v1562 = vpack.c.b16 %v1552, %v1551
  %v1563 = vpack.c.b16 %v1554, %v1553
  %v1564 = vpack.c.b16 %v1556, %v1555
  %1573 = vmatprep.subr.bf16.mxu0 0
  %1574 = vmatpush1.bf16.msra.mxu0 %v1564
  %1575 = vmatprep.subr.bf16.mxu0 0
  %1576 = vmatpush1.bf16.msra.mxu0 %v1563
  %1577 = vmatprep.subr.bf16.mxu0 0
  %1578 = vmatpush1.bf16.msra.mxu0 %v1562
  %1579 = vmatprep.subr.bf16.mxu0 0
  %1580 = vmatpush1.bf16.msra.mxu0 %v1561
  %1581 = vmatprep.subr.bf16.mxu0 0
  %1582 = vmatpush1.bf16.msra.mxu0 %v1560
  %1583 = vmatprep.subr.bf16.mxu0 0
  %1584 = vmatpush1.bf16.msra.mxu0 %v1559
  %1585 = vmatprep.subr.bf16.mxu0 0
  %1586 = vmatpush1.bf16.msra.mxu0 %v1558
  %1587 = vmatprep.subr.bf16.mxu0 0
  %1588 = vmatpush1.bf16.msra.mxu0 %v1557
  %1589 = vmatprep.subr.bf16.mxu0 0
  %1590 = vmatpush2.bf16.msra.mxu0 0
  %1591 = vmatprep.subr.bf16.mxu0 0
  %1592 = vmatpush2.bf16.msra.mxu0 0
  %1593 = vmatprep.subr.bf16.mxu0 0
  %1594 = vmatpush2.bf16.msra.mxu0 0
  %1595 = vmatprep.subr.bf16.mxu0 0
  %1596 = vmatpush2.bf16.msra.mxu0 0
  %1597 = vmatprep.subr.bf16.mxu0 0
  %1598 = vmatpush2.bf16.msra.mxu0 0
  %1599 = vmatprep.subr.bf16.mxu0 0
  %1600 = vmatpush2.bf16.msra.mxu0 0
  %1601 = vmatprep.subr.bf16.mxu0 0
  %1602 = vmatpush2.bf16.msra.mxu0 0
  %1603 = vmatprep.subr.bf16.mxu0 0
  %1604 = vmatpush2.bf16.msra.mxu0 0
  %1605 = vmatprep.mubr.bf16.mxu0 0
  %1606 = vmatmul.mubr.bf16.gmra.mxu0 %v1503
  %v1607 = vpop.f32.mrf.mxu0
  %v1608 = vadd.f32 %v1524, %v1607
  %v1609 = vpop.f32.mrf.mxu0
  %v1610 = vpop.f32.mrf.mxu0
  %v1611 = vpop.f32.mrf.mxu0
  %1612 = vdwg.mxu0
  %vm1613 = vcmp.gt.f32.partialorder %v1608, 0.0
  %v1614 = vmul.f32 %v1608, 0.2
  %v1615 = vsel %vm1613, %v1608, %v1614
  %v1616 = vpack.c.bf16 %v1615, %v1615
  %s1617 = scalar_lea.vmem %s3, 384
  %v1618 = vld [vmem:[%s1617] sm:$0xf]
  %v1619 = vld [vmem:[%s1617 + $0x4] sm:$0xf]
  %v1620 = vld [vmem:[%s1617 + $0x8] sm:$0xf]
  %v1621 = vld [vmem:[%s1617 + $0xc] sm:$0xf]
  %v1622 = vld [vmem:[%s1617 + $0x10] sm:$0xf]
  %v1623 = vld [vmem:[%s1617 + $0x14] sm:$0xf]
  %v1624 = vld [vmem:[%s1617 + $0x18] sm:$0xf]
  %v1625 = vld [vmem:[%s1617 + $0x1c] sm:$0xf]
  %v1626 = vld [vmem:[%s1617 + $0x20] sm:$0xf]
  %v1627 = vld [vmem:[%s1617 + $0x24] sm:$0xf]
  %v1628 = vld [vmem:[%s1617 + $0x28] sm:$0xf]
  %v1629 = vld [vmem:[%s1617 + $0x2c] sm:$0xf]
  %v1630 = vld [vmem:[%s1617 + $0x30] sm:$0xf]
  %v1631 = vld [vmem:[%s1617 + $0x34] sm:$0xf]
  %v1632 = vld [vmem:[%s1617 + $0x38] sm:$0xf]
  %v1633 = vld [vmem:[%s1617 + $0x3c] sm:$0xf]
  %v1634 = vlaneseq
  %v1635 = vshrl.u32 %v1634, 7
  %v1636 = vsub.s32 0, %v1635
  %v1637 = vrot.slane %v25, %v1636
  %v1654 = vunpack.c.l.b16 %v1618
  %v1655 = vunpack.c.l.b16 %v1619
  %v1656 = vunpack.c.l.b16 %v1620
  %v1657 = vunpack.c.l.b16 %v1621
  %v1658 = vunpack.c.l.b16 %v1622
  %v1659 = vunpack.c.l.b16 %v1623
  %v1660 = vunpack.c.l.b16 %v1624
  %v1661 = vunpack.c.l.b16 %v1625
  %v1662 = vunpack.c.l.b16 %v1626
  %v1663 = vunpack.c.l.b16 %v1627
  %v1664 = vunpack.c.l.b16 %v1628
  %v1665 = vunpack.c.l.b16 %v1629
  %v1666 = vunpack.c.l.b16 %v1630
  %v1667 = vunpack.c.l.b16 %v1631
  %v1668 = vunpack.c.l.b16 %v1632
  %v1669 = vunpack.c.l.b16 %v1633
  %v1670 = vpack.c.b16 %v1655, %v1654
  %v1671 = vpack.c.b16 %v1657, %v1656
  %v1672 = vpack.c.b16 %v1659, %v1658
  %v1673 = vpack.c.b16 %v1661, %v1660
  %v1674 = vpack.c.b16 %v1663, %v1662
  %v1675 = vpack.c.b16 %v1665, %v1664
  %v1676 = vpack.c.b16 %v1667, %v1666
  %v1677 = vpack.c.b16 %v1669, %v1668
  %1686 = vmatprep.subr.bf16.mxu0 0
  %1687 = vmatpush1.bf16.msra.mxu0 %v1677
  %1688 = vmatprep.subr.bf16.mxu0 0
  %1689 = vmatpush1.bf16.msra.mxu0 %v1676
  %1690 = vmatprep.subr.bf16.mxu0 0
  %1691 = vmatpush1.bf16.msra.mxu0 %v1675
  %1692 = vmatprep.subr.bf16.mxu0 0
  %1693 = vmatpush1.bf16.msra.mxu0 %v1674
  %1694 = vmatprep.subr.bf16.mxu0 0
  %1695 = vmatpush1.bf16.msra.mxu0 %v1673
  %1696 = vmatprep.subr.bf16.mxu0 0
  %1697 = vmatpush1.bf16.msra.mxu0 %v1672
  %1698 = vmatprep.subr.bf16.mxu0 0
  %1699 = vmatpush1.bf16.msra.mxu0 %v1671
  %1700 = vmatprep.subr.bf16.mxu0 0
  %1701 = vmatpush1.bf16.msra.mxu0 %v1670
  %1702 = vmatprep.subr.bf16.mxu0 0
  %1703 = vmatpush2.bf16.msra.mxu0 0
  %1704 = vmatprep.subr.bf16.mxu0 0
  %1705 = vmatpush2.bf16.msra.mxu0 0
  %1706 = vmatprep.subr.bf16.mxu0 0
  %1707 = vmatpush2.bf16.msra.mxu0 0
  %1708 = vmatprep.subr.bf16.mxu0 0
  %1709 = vmatpush2.bf16.msra.mxu0 0
  %1710 = vmatprep.subr.bf16.mxu0 0
  %1711 = vmatpush2.bf16.msra.mxu0 0
  %1712 = vmatprep.subr.bf16.mxu0 0
  %1713 = vmatpush2.bf16.msra.mxu0 0
  %1714 = vmatprep.subr.bf16.mxu0 0
  %1715 = vmatpush2.bf16.msra.mxu0 0
  %1716 = vmatprep.subr.bf16.mxu0 0
  %1717 = vmatpush2.bf16.msra.mxu0 0
  %1718 = vmatprep.mubr.bf16.mxu0 0
  %1719 = vmatmul.mubr.bf16.gmra.mxu0 %v1616
  %v1720 = vpop.f32.mrf.mxu0
  %v1721 = vadd.f32 %v1637, %v1720
  %v1722 = vpop.f32.mrf.mxu0
  %v1723 = vpop.f32.mrf.mxu0
  %v1724 = vpop.f32.mrf.mxu0
  %1725 = vdwg.mxu0
  %v1726 = vadd.f32 %v1721, %v1502
  %v1727 = vpack.c.bf16 %v1726, %v1726
  %s1728 = scalar_lea.vmem %s3, 128
  %v1729 = vld [vmem:[%s1728] sm:$0xf]
  %v1730 = vld [vmem:[%s1728 + $0x4] sm:$0xf]
  %v1731 = vld [vmem:[%s1728 + $0x8] sm:$0xf]
  %v1732 = vld [vmem:[%s1728 + $0xc] sm:$0xf]
  %v1733 = vld [vmem:[%s1728 + $0x10] sm:$0xf]
  %v1734 = vld [vmem:[%s1728 + $0x14] sm:$0xf]
  %v1735 = vld [vmem:[%s1728 + $0x18] sm:$0xf]
  %v1736 = vld [vmem:[%s1728 + $0x1c] sm:$0xf]
  %v1737 = vld [vmem:[%s1728 + $0x20] sm:$0xf]
  %v1738 = vld [vmem:[%s1728 + $0x24] sm:$0xf]
  %v1739 = vld [vmem:[%s1728 + $0x28] sm:$0xf]
  %v1740 = vld [vmem:[%s1728 + $0x2c] sm:$0xf]
  %v1741 = vld [vmem:[%s1728 + $0x30] sm:$0xf]
  %v1742 = vld [vmem:[%s1728 + $0x34] sm:$0xf]
  %v1743 = vld [vmem:[%s1728 + $0x38] sm:$0xf]
  %v1744 = vld [vmem:[%s1728 + $0x3c] sm:$0xf]
  %v1745 = vlaneseq
  %v1746 = vshrl.u32 %v1745, 7
  %v1747 = vsub.s32 4, %v1746
  %v1748 = vrot.slane %v24, %v1747
  %v1765 = vunpack.c.l.b16 %v1729
  %v1766 = vunpack.c.l.b16 %v1730
  %v1767 = vunpack.c.l.b16 %v1731
  %v1768 = vunpack.c.l.b16 %v1732
  %v1769 = vunpack.c.l.b16 %v1733
  %v1770 = vunpack.c.l.b16 %v1734
  %v1771 = vunpack.c.l.b16 %v1735
  %v1772 = vunpack.c.l.b16 %v1736
  %v1773 = vunpack.c.l.b16 %v1737
  %v1774 = vunpack.c.l.b16 %v1738
  %v1775 = vunpack.c.l.b16 %v1739
  %v1776 = vunpack.c.l.b16 %v1740
  %v1777 = vunpack.c.l.b16 %v1741
  %v1778 = vunpack.c.l.b16 %v1742
  %v1779 = vunpack.c.l.b16 %v1743
  %v1780 = vunpack.c.l.b16 %v1744
  %v1781 = vpack.c.b16 %v1766, %v1765
  %v1782 = vpack.c.b16 %v1768, %v1767
  %v1783 = vpack.c.b16 %v1770, %v1769
  %v1784 = vpack.c.b16 %v1772, %v1771
  %v1785 = vpack.c.b16 %v1774, %v1773
  %v1786 = vpack.c.b16 %v1776, %v1775
  %v1787 = vpack.c.b16 %v1778, %v1777
  %v1788 = vpack.c.b16 %v1780, %v1779
  %1797 = vmatprep.subr.bf16.mxu0 0
  %1798 = vmatpush1.bf16.msra.mxu0 %v1788
  %1799 = vmatprep.subr.bf16.mxu0 0
  %1800 = vmatpush1.bf16.msra.mxu0 %v1787
  %1801 = vmatprep.subr.bf16.mxu0 0
  %1802 = vmatpush1.bf16.msra.mxu0 %v1786
  %1803 = vmatprep.subr.bf16.mxu0 0
  %1804 = vmatpush1.bf16.msra.mxu0 %v1785
  %1805 = vmatprep.subr.bf16.mxu0 0
  %1806 = vmatpush1.bf16.msra.mxu0 %v1784
  %1807 = vmatprep.subr.bf16.mxu0 0
  %1808 = vmatpush1.bf16.msra.mxu0 %v1783
  %1809 = vmatprep.subr.bf16.mxu0 0
  %1810 = vmatpush1.bf16.msra.mxu0 %v1782
  %1811 = vmatprep.subr.bf16.mxu0 0
  %1812 = vmatpush1.bf16.msra.mxu0 %v1781
  %1813 = vmatprep.subr.bf16.mxu0 0
  %1814 = vmatpush2.bf16.msra.mxu0 0
  %1815 = vmatprep.subr.bf16.mxu0 0
  %1816 = vmatpush2.bf16.msra.mxu0 0
  %1817 = vmatprep.subr.bf16.mxu0 0
  %1818 = vmatpush2.bf16.msra.mxu0 0
  %1819 = vmatprep.subr.bf16.mxu0 0
  %1820 = vmatpush2.bf16.msra.mxu0 0
  %1821 = vmatprep.subr.bf16.mxu0 0
  %1822 = vmatpush2.bf16.msra.mxu0 0
  %1823 = vmatprep.subr.bf16.mxu0 0
  %1824 = vmatpush2.bf16.msra.mxu0 0
  %1825 = vmatprep.subr.bf16.mxu0 0
  %1826 = vmatpush2.bf16.msra.mxu0 0
  %1827 = vmatprep.subr.bf16.mxu0 0
  %1828 = vmatpush2.bf16.msra.mxu0 0
  %1829 = vmatprep.mubr.bf16.mxu0 0
  %1830 = vmatmul.mubr.bf16.gmra.mxu0 %v1727
  %v1831 = vpop.f32.mrf.mxu0
  %v1832 = vadd.f32 %v1748, %v1831
  %v1833 = vpop.f32.mrf.mxu0
  %v1834 = vpop.f32.mrf.mxu0
  %v1835 = vpop.f32.mrf.mxu0
  %1836 = vdwg.mxu0
  %vm1837 = vcmp.gt.f32.partialorder %v1832, 0.0
  %v1838 = vmul.f32 %v1832, 0.2
  %v1839 = vsel %vm1837, %v1832, %v1838
  %v1840 = vpack.c.bf16 %v1839, %v1839
  %s1841 = scalar_lea.vmem %s3, 448
  %v1842 = vld [vmem:[%s1841] sm:$0xf]
  %v1843 = vld [vmem:[%s1841 + $0x4] sm:$0xf]
  %v1844 = vld [vmem:[%s1841 + $0x8] sm:$0xf]
  %v1845 = vld [vmem:[%s1841 + $0xc] sm:$0xf]
  %v1846 = vld [vmem:[%s1841 + $0x10] sm:$0xf]
  %v1847 = vld [vmem:[%s1841 + $0x14] sm:$0xf]
  %v1848 = vld [vmem:[%s1841 + $0x18] sm:$0xf]
  %v1849 = vld [vmem:[%s1841 + $0x1c] sm:$0xf]
  %v1850 = vld [vmem:[%s1841 + $0x20] sm:$0xf]
  %v1851 = vld [vmem:[%s1841 + $0x24] sm:$0xf]
  %v1852 = vld [vmem:[%s1841 + $0x28] sm:$0xf]
  %v1853 = vld [vmem:[%s1841 + $0x2c] sm:$0xf]
  %v1854 = vld [vmem:[%s1841 + $0x30] sm:$0xf]
  %v1855 = vld [vmem:[%s1841 + $0x34] sm:$0xf]
  %v1856 = vld [vmem:[%s1841 + $0x38] sm:$0xf]
  %v1857 = vld [vmem:[%s1841 + $0x3c] sm:$0xf]
  %v1858 = vlaneseq
  %v1859 = vshrl.u32 %v1858, 7
  %v1860 = vsub.s32 1, %v1859
  %v1861 = vrot.slane %v25, %v1860
  %v1878 = vunpack.c.l.b16 %v1842
  %v1879 = vunpack.c.l.b16 %v1843
  %v1880 = vunpack.c.l.b16 %v1844
  %v1881 = vunpack.c.l.b16 %v1845
  %v1882 = vunpack.c.l.b16 %v1846
  %v1883 = vunpack.c.l.b16 %v1847
  %v1884 = vunpack.c.l.b16 %v1848
  %v1885 = vunpack.c.l.b16 %v1849
  %v1886 = vunpack.c.l.b16 %v1850
  %v1887 = vunpack.c.l.b16 %v1851
  %v1888 = vunpack.c.l.b16 %v1852
  %v1889 = vunpack.c.l.b16 %v1853
  %v1890 = vunpack.c.l.b16 %v1854
  %v1891 = vunpack.c.l.b16 %v1855
  %v1892 = vunpack.c.l.b16 %v1856
  %v1893 = vunpack.c.l.b16 %v1857
  %v1894 = vpack.c.b16 %v1879, %v1878
  %v1895 = vpack.c.b16 %v1881, %v1880
  %v1896 = vpack.c.b16 %v1883, %v1882
  %v1897 = vpack.c.b16 %v1885, %v1884
  %v1898 = vpack.c.b16 %v1887, %v1886
  %v1899 = vpack.c.b16 %v1889, %v1888
  %v1900 = vpack.c.b16 %v1891, %v1890
  %v1901 = vpack.c.b16 %v1893, %v1892
  %1910 = vmatprep.subr.bf16.mxu0 0
  %1911 = vmatpush1.bf16.msra.mxu0 %v1901
  %1912 = vmatprep.subr.bf16.mxu0 0
  %1913 = vmatpush1.bf16.msra.mxu0 %v1900
  %1914 = vmatprep.subr.bf16.mxu0 0
  %1915 = vmatpush1.bf16.msra.mxu0 %v1899
  %1916 = vmatprep.subr.bf16.mxu0 0
  %1917 = vmatpush1.bf16.msra.mxu0 %v1898
  %1918 = vmatprep.subr.bf16.mxu0 0
  %1919 = vmatpush1.bf16.msra.mxu0 %v1897
  %1920 = vmatprep.subr.bf16.mxu0 0
  %1921 = vmatpush1.bf16.msra.mxu0 %v1896
  %1922 = vmatprep.subr.bf16.mxu0 0
  %1923 = vmatpush1.bf16.msra.mxu0 %v1895
  %1924 = vmatprep.subr.bf16.mxu0 0
  %1925 = vmatpush1.bf16.msra.mxu0 %v1894
  %1926 = vmatprep.subr.bf16.mxu0 0
  %1927 = vmatpush2.bf16.msra.mxu0 0
  %1928 = vmatprep.subr.bf16.mxu0 0
  %1929 = vmatpush2.bf16.msra.mxu0 0
  %1930 = vmatprep.subr.bf16.mxu0 0
  %1931 = vmatpush2.bf16.msra.mxu0 0
  %1932 = vmatprep.subr.bf16.mxu0 0
  %1933 = vmatpush2.bf16.msra.mxu0 0
  %1934 = vmatprep.subr.bf16.mxu0 0
  %1935 = vmatpush2.bf16.msra.mxu0 0
  %1936 = vmatprep.subr.bf16.mxu0 0
  %1937 = vmatpush2.bf16.msra.mxu0 0
  %1938 = vmatprep.subr.bf16.mxu0 0
  %1939 = vmatpush2.bf16.msra.mxu0 0
  %1940 = vmatprep.subr.bf16.mxu0 0
  %1941 = vmatpush2.bf16.msra.mxu0 0
  %1942 = vmatprep.mubr.bf16.mxu0 0
  %1943 = vmatmul.mubr.bf16.gmra.mxu0 %v1840
  %v1944 = vpop.f32.mrf.mxu0
  %v1945 = vadd.f32 %v1861, %v1944
  %v1946 = vpop.f32.mrf.mxu0
  %v1947 = vpop.f32.mrf.mxu0
  %v1948 = vpop.f32.mrf.mxu0
  %1949 = vdwg.mxu0
  %v1950 = vadd.f32 %v1945, %v1726
  %v1951 = vpack.c.bf16 %v1950, %v1950
  %s1952 = scalar_lea.vmem %s3, 192
  %v1953 = vld [vmem:[%s1952] sm:$0xf]
  %v1954 = vld [vmem:[%s1952 + $0x4] sm:$0xf]
  %v1955 = vld [vmem:[%s1952 + $0x8] sm:$0xf]
  %v1956 = vld [vmem:[%s1952 + $0xc] sm:$0xf]
  %v1957 = vld [vmem:[%s1952 + $0x10] sm:$0xf]
  %v1958 = vld [vmem:[%s1952 + $0x14] sm:$0xf]
  %v1959 = vld [vmem:[%s1952 + $0x18] sm:$0xf]
  %v1960 = vld [vmem:[%s1952 + $0x1c] sm:$0xf]
  %v1961 = vld [vmem:[%s1952 + $0x20] sm:$0xf]
  %v1962 = vld [vmem:[%s1952 + $0x24] sm:$0xf]
  %v1963 = vld [vmem:[%s1952 + $0x28] sm:$0xf]
  %v1964 = vld [vmem:[%s1952 + $0x2c] sm:$0xf]
  %v1965 = vld [vmem:[%s1952 + $0x30] sm:$0xf]
  %v1966 = vld [vmem:[%s1952 + $0x34] sm:$0xf]
  %v1967 = vld [vmem:[%s1952 + $0x38] sm:$0xf]
  %v1968 = vld [vmem:[%s1952 + $0x3c] sm:$0xf]
  %v1969 = vlaneseq
  %v1970 = vshrl.u32 %v1969, 7
  %v1971 = vsub.s32 5, %v1970
  %v1972 = vrot.slane %v24, %v1971
  %v1989 = vunpack.c.l.b16 %v1953
  %v1990 = vunpack.c.l.b16 %v1954
  %v1991 = vunpack.c.l.b16 %v1955
  %v1992 = vunpack.c.l.b16 %v1956
  %v1993 = vunpack.c.l.b16 %v1957
  %v1994 = vunpack.c.l.b16 %v1958
  %v1995 = vunpack.c.l.b16 %v1959
  %v1996 = vunpack.c.l.b16 %v1960
  %v1997 = vunpack.c.l.b16 %v1961
  %v1998 = vunpack.c.l.b16 %v1962
  %v1999 = vunpack.c.l.b16 %v1963
  %v2000 = vunpack.c.l.b16 %v1964
  %v2001 = vunpack.c.l.b16 %v1965
  %v2002 = vunpack.c.l.b16 %v1966
  %v2003 = vunpack.c.l.b16 %v1967
  %v2004 = vunpack.c.l.b16 %v1968
  %v2005 = vpack.c.b16 %v1990, %v1989
  %v2006 = vpack.c.b16 %v1992, %v1991
  %v2007 = vpack.c.b16 %v1994, %v1993
  %v2008 = vpack.c.b16 %v1996, %v1995
  %v2009 = vpack.c.b16 %v1998, %v1997
  %v2010 = vpack.c.b16 %v2000, %v1999
  %v2011 = vpack.c.b16 %v2002, %v2001
  %v2012 = vpack.c.b16 %v2004, %v2003
  %2021 = vmatprep.subr.bf16.mxu0 0
  %2022 = vmatpush1.bf16.msra.mxu0 %v2012
  %2023 = vmatprep.subr.bf16.mxu0 0
  %2024 = vmatpush1.bf16.msra.mxu0 %v2011
  %2025 = vmatprep.subr.bf16.mxu0 0
  %2026 = vmatpush1.bf16.msra.mxu0 %v2010
  %2027 = vmatprep.subr.bf16.mxu0 0
  %2028 = vmatpush1.bf16.msra.mxu0 %v2009
  %2029 = vmatprep.subr.bf16.mxu0 0
  %2030 = vmatpush1.bf16.msra.mxu0 %v2008
  %2031 = vmatprep.subr.bf16.mxu0 0
  %2032 = vmatpush1.bf16.msra.mxu0 %v2007
  %2033 = vmatprep.subr.bf16.mxu0 0
  %2034 = vmatpush1.bf16.msra.mxu0 %v2006
  %2035 = vmatprep.subr.bf16.mxu0 0
  %2036 = vmatpush1.bf16.msra.mxu0 %v2005
  %2037 = vmatprep.subr.bf16.mxu0 0
  %2038 = vmatpush2.bf16.msra.mxu0 0
  %2039 = vmatprep.subr.bf16.mxu0 0
  %2040 = vmatpush2.bf16.msra.mxu0 0
  %2041 = vmatprep.subr.bf16.mxu0 0
  %2042 = vmatpush2.bf16.msra.mxu0 0
  %2043 = vmatprep.subr.bf16.mxu0 0
  %2044 = vmatpush2.bf16.msra.mxu0 0
  %2045 = vmatprep.subr.bf16.mxu0 0
  %2046 = vmatpush2.bf16.msra.mxu0 0
  %2047 = vmatprep.subr.bf16.mxu0 0
  %2048 = vmatpush2.bf16.msra.mxu0 0
  %2049 = vmatprep.subr.bf16.mxu0 0
  %2050 = vmatpush2.bf16.msra.mxu0 0
  %2051 = vmatprep.subr.bf16.mxu0 0
  %2052 = vmatpush2.bf16.msra.mxu0 0
  %2053 = vmatprep.mubr.bf16.mxu0 0
  %2054 = vmatmul.mubr.bf16.gmra.mxu0 %v1951
  %v2055 = vpop.f32.mrf.mxu0
  %v2056 = vadd.f32 %v1972, %v2055
  %v2057 = vpop.f32.mrf.mxu0
  %v2058 = vpop.f32.mrf.mxu0
  %v2059 = vpop.f32.mrf.mxu0
  %2060 = vdwg.mxu0
  %vm2061 = vcmp.gt.f32.partialorder %v2056, 0.0
  %v2062 = vmul.f32 %v2056, 0.2
  %v2063 = vsel %vm2061, %v2056, %v2062
  %v2064 = vpack.c.bf16 %v2063, %v2063
  %s2065 = scalar_lea.vmem %s3, 512
  %v2066 = vld [vmem:[%s2065] sm:$0xf]
  %v2067 = vld [vmem:[%s2065 + $0x4] sm:$0xf]
  %v2068 = vld [vmem:[%s2065 + $0x8] sm:$0xf]
  %v2069 = vld [vmem:[%s2065 + $0xc] sm:$0xf]
  %v2070 = vld [vmem:[%s2065 + $0x10] sm:$0xf]
  %v2071 = vld [vmem:[%s2065 + $0x14] sm:$0xf]
  %v2072 = vld [vmem:[%s2065 + $0x18] sm:$0xf]
  %v2073 = vld [vmem:[%s2065 + $0x1c] sm:$0xf]
  %v2074 = vld [vmem:[%s2065 + $0x20] sm:$0xf]
  %v2075 = vld [vmem:[%s2065 + $0x24] sm:$0xf]
  %v2076 = vld [vmem:[%s2065 + $0x28] sm:$0xf]
  %v2077 = vld [vmem:[%s2065 + $0x2c] sm:$0xf]
  %v2078 = vld [vmem:[%s2065 + $0x30] sm:$0xf]
  %v2079 = vld [vmem:[%s2065 + $0x34] sm:$0xf]
  %v2080 = vld [vmem:[%s2065 + $0x38] sm:$0xf]
  %v2081 = vld [vmem:[%s2065 + $0x3c] sm:$0xf]
  %v2082 = vlaneseq
  %v2083 = vshrl.u32 %v2082, 7
  %v2084 = vsub.s32 2, %v2083
  %v2085 = vrot.slane %v25, %v2084
  %v2102 = vunpack.c.l.b16 %v2066
  %v2103 = vunpack.c.l.b16 %v2067
  %v2104 = vunpack.c.l.b16 %v2068
  %v2105 = vunpack.c.l.b16 %v2069
  %v2106 = vunpack.c.l.b16 %v2070
  %v2107 = vunpack.c.l.b16 %v2071
  %v2108 = vunpack.c.l.b16 %v2072
  %v2109 = vunpack.c.l.b16 %v2073
  %v2110 = vunpack.c.l.b16 %v2074
  %v2111 = vunpack.c.l.b16 %v2075
  %v2112 = vunpack.c.l.b16 %v2076
  %v2113 = vunpack.c.l.b16 %v2077
  %v2114 = vunpack.c.l.b16 %v2078
  %v2115 = vunpack.c.l.b16 %v2079
  %v2116 = vunpack.c.l.b16 %v2080
  %v2117 = vunpack.c.l.b16 %v2081
  %v2118 = vpack.c.b16 %v2103, %v2102
  %v2119 = vpack.c.b16 %v2105, %v2104
  %v2120 = vpack.c.b16 %v2107, %v2106
  %v2121 = vpack.c.b16 %v2109, %v2108
  %v2122 = vpack.c.b16 %v2111, %v2110
  %v2123 = vpack.c.b16 %v2113, %v2112
  %v2124 = vpack.c.b16 %v2115, %v2114
  %v2125 = vpack.c.b16 %v2117, %v2116
  %2134 = vmatprep.subr.bf16.mxu0 0
  %2135 = vmatpush1.bf16.msra.mxu0 %v2125
  %2136 = vmatprep.subr.bf16.mxu0 0
  %2137 = vmatpush1.bf16.msra.mxu0 %v2124
  %2138 = vmatprep.subr.bf16.mxu0 0
  %2139 = vmatpush1.bf16.msra.mxu0 %v2123
  %2140 = vmatprep.subr.bf16.mxu0 0
  %2141 = vmatpush1.bf16.msra.mxu0 %v2122
  %2142 = vmatprep.subr.bf16.mxu0 0
  %2143 = vmatpush1.bf16.msra.mxu0 %v2121
  %2144 = vmatprep.subr.bf16.mxu0 0
  %2145 = vmatpush1.bf16.msra.mxu0 %v2120
  %2146 = vmatprep.subr.bf16.mxu0 0
  %2147 = vmatpush1.bf16.msra.mxu0 %v2119
  %2148 = vmatprep.subr.bf16.mxu0 0
  %2149 = vmatpush1.bf16.msra.mxu0 %v2118
  %2150 = vmatprep.subr.bf16.mxu0 0
  %2151 = vmatpush2.bf16.msra.mxu0 0
  %2152 = vmatprep.subr.bf16.mxu0 0
  %2153 = vmatpush2.bf16.msra.mxu0 0
  %2154 = vmatprep.subr.bf16.mxu0 0
  %2155 = vmatpush2.bf16.msra.mxu0 0
  %2156 = vmatprep.subr.bf16.mxu0 0
  %2157 = vmatpush2.bf16.msra.mxu0 0
  %2158 = vmatprep.subr.bf16.mxu0 0
  %2159 = vmatpush2.bf16.msra.mxu0 0
  %2160 = vmatprep.subr.bf16.mxu0 0
  %2161 = vmatpush2.bf16.msra.mxu0 0
  %2162 = vmatprep.subr.bf16.mxu0 0
  %2163 = vmatpush2.bf16.msra.mxu0 0
  %2164 = vmatprep.subr.bf16.mxu0 0
  %2165 = vmatpush2.bf16.msra.mxu0 0
  %2166 = vmatprep.mubr.bf16.mxu0 0
  %2167 = vmatmul.mubr.bf16.gmra.mxu0 %v2064
  %v2168 = vpop.f32.mrf.mxu0
  %v2169 = vadd.f32 %v2085, %v2168
  %v2170 = vpop.f32.mrf.mxu0
  %v2171 = vpop.f32.mrf.mxu0
  %v2172 = vpop.f32.mrf.mxu0
  %2173 = vdwg.mxu0
  %v2174 = vadd.f32 %v2169, %v1950
  %v2175 = vpack.c.bf16 %v2174, %v2174
  %s2176 = scalar_lea.vmem %s3, 256
  %v2177 = vld [vmem:[%s2176] sm:$0xf]
  %v2178 = vld [vmem:[%s2176 + $0x4] sm:$0xf]
  %v2179 = vld [vmem:[%s2176 + $0x8] sm:$0xf]
  %v2180 = vld [vmem:[%s2176 + $0xc] sm:$0xf]
  %v2181 = vld [vmem:[%s2176 + $0x10] sm:$0xf]
  %v2182 = vld [vmem:[%s2176 + $0x14] sm:$0xf]
  %v2183 = vld [vmem:[%s2176 + $0x18] sm:$0xf]
  %v2184 = vld [vmem:[%s2176 + $0x1c] sm:$0xf]
  %v2185 = vld [vmem:[%s2176 + $0x20] sm:$0xf]
  %v2186 = vld [vmem:[%s2176 + $0x24] sm:$0xf]
  %v2187 = vld [vmem:[%s2176 + $0x28] sm:$0xf]
  %v2188 = vld [vmem:[%s2176 + $0x2c] sm:$0xf]
  %v2189 = vld [vmem:[%s2176 + $0x30] sm:$0xf]
  %v2190 = vld [vmem:[%s2176 + $0x34] sm:$0xf]
  %v2191 = vld [vmem:[%s2176 + $0x38] sm:$0xf]
  %v2192 = vld [vmem:[%s2176 + $0x3c] sm:$0xf]
  %v2193 = vlaneseq
  %v2194 = vshrl.u32 %v2193, 7
  %v2195 = vsub.s32 6, %v2194
  %v2196 = vrot.slane %v24, %v2195
  %v2213 = vunpack.c.l.b16 %v2177
  %v2214 = vunpack.c.l.b16 %v2178
  %v2215 = vunpack.c.l.b16 %v2179
  %v2216 = vunpack.c.l.b16 %v2180
  %v2217 = vunpack.c.l.b16 %v2181
  %v2218 = vunpack.c.l.b16 %v2182
  %v2219 = vunpack.c.l.b16 %v2183
  %v2220 = vunpack.c.l.b16 %v2184
  %v2221 = vunpack.c.l.b16 %v2185
  %v2222 = vunpack.c.l.b16 %v2186
  %v2223 = vunpack.c.l.b16 %v2187
  %v2224 = vunpack.c.l.b16 %v2188
  %v2225 = vunpack.c.l.b16 %v2189
  %v2226 = vunpack.c.l.b16 %v2190
  %v2227 = vunpack.c.l.b16 %v2191
  %v2228 = vunpack.c.l.b16 %v2192
  %v2229 = vpack.c.b16 %v2214, %v2213
  %v2230 = vpack.c.b16 %v2216, %v2215
  %v2231 = vpack.c.b16 %v2218, %v2217
  %v2232 = vpack.c.b16 %v2220, %v2219
  %v2233 = vpack.c.b16 %v2222, %v2221
  %v2234 = vpack.c.b16 %v2224, %v2223
  %v2235 = vpack.c.b16 %v2226, %v2225
  %v2236 = vpack.c.b16 %v2228, %v2227
  %2245 = vmatprep.subr.bf16.mxu0 0
  %2246 = vmatpush1.bf16.msra.mxu0 %v2236
  %2247 = vmatprep.subr.bf16.mxu0 0
  %2248 = vmatpush1.bf16.msra.mxu0 %v2235
  %2249 = vmatprep.subr.bf16.mxu0 0
  %2250 = vmatpush1.bf16.msra.mxu0 %v2234
  %2251 = vmatprep.subr.bf16.mxu0 0
  %2252 = vmatpush1.bf16.msra.mxu0 %v2233
  %2253 = vmatprep.subr.bf16.mxu0 0
  %2254 = vmatpush1.bf16.msra.mxu0 %v2232
  %2255 = vmatprep.subr.bf16.mxu0 0
  %2256 = vmatpush1.bf16.msra.mxu0 %v2231
  %2257 = vmatprep.subr.bf16.mxu0 0
  %2258 = vmatpush1.bf16.msra.mxu0 %v2230
  %2259 = vmatprep.subr.bf16.mxu0 0
  %2260 = vmatpush1.bf16.msra.mxu0 %v2229
  %2261 = vmatprep.subr.bf16.mxu0 0
  %2262 = vmatpush2.bf16.msra.mxu0 0
  %2263 = vmatprep.subr.bf16.mxu0 0
  %2264 = vmatpush2.bf16.msra.mxu0 0
  %2265 = vmatprep.subr.bf16.mxu0 0
  %2266 = vmatpush2.bf16.msra.mxu0 0
  %2267 = vmatprep.subr.bf16.mxu0 0
  %2268 = vmatpush2.bf16.msra.mxu0 0
  %2269 = vmatprep.subr.bf16.mxu0 0
  %2270 = vmatpush2.bf16.msra.mxu0 0
  %2271 = vmatprep.subr.bf16.mxu0 0
  %2272 = vmatpush2.bf16.msra.mxu0 0
  %2273 = vmatprep.subr.bf16.mxu0 0
  %2274 = vmatpush2.bf16.msra.mxu0 0
  %2275 = vmatprep.subr.bf16.mxu0 0
  %2276 = vmatpush2.bf16.msra.mxu0 0
  %2277 = vmatprep.mubr.bf16.mxu0 0
  %2278 = vmatmul.mubr.bf16.gmra.mxu0 %v2175
  %v2279 = vpop.f32.mrf.mxu0
  %v2280 = vadd.f32 %v2196, %v2279
  %v2281 = vpop.f32.mrf.mxu0
  %v2282 = vpop.f32.mrf.mxu0
  %v2283 = vpop.f32.mrf.mxu0
  %2284 = vdwg.mxu0
  %vm2285 = vcmp.gt.f32.partialorder %v2280, 0.0
  %v2286 = vmul.f32 %v2280, 0.2
  %v2287 = vsel %vm2285, %v2280, %v2286
  %v2288 = vpack.c.bf16 %v2287, %v2287
  %s2289 = scalar_lea.vmem %s3, 576
  %v2290 = vld [vmem:[%s2289] sm:$0xf]
  %v2291 = vld [vmem:[%s2289 + $0x4] sm:$0xf]
  %v2292 = vld [vmem:[%s2289 + $0x8] sm:$0xf]
  %v2293 = vld [vmem:[%s2289 + $0xc] sm:$0xf]
  %v2294 = vld [vmem:[%s2289 + $0x10] sm:$0xf]
  %v2295 = vld [vmem:[%s2289 + $0x14] sm:$0xf]
  %v2296 = vld [vmem:[%s2289 + $0x18] sm:$0xf]
  %v2297 = vld [vmem:[%s2289 + $0x1c] sm:$0xf]
  %v2298 = vld [vmem:[%s2289 + $0x20] sm:$0xf]
  %v2299 = vld [vmem:[%s2289 + $0x24] sm:$0xf]
  %v2300 = vld [vmem:[%s2289 + $0x28] sm:$0xf]
  %v2301 = vld [vmem:[%s2289 + $0x2c] sm:$0xf]
  %v2302 = vld [vmem:[%s2289 + $0x30] sm:$0xf]
  %v2303 = vld [vmem:[%s2289 + $0x34] sm:$0xf]
  %v2304 = vld [vmem:[%s2289 + $0x38] sm:$0xf]
  %v2305 = vld [vmem:[%s2289 + $0x3c] sm:$0xf]
  %v2306 = vlaneseq
  %v2307 = vshrl.u32 %v2306, 7
  %v2308 = vsub.s32 3, %v2307
  %v2309 = vrot.slane %v25, %v2308
  %v2326 = vunpack.c.l.b16 %v2290
  %v2327 = vunpack.c.l.b16 %v2291
  %v2328 = vunpack.c.l.b16 %v2292
  %v2329 = vunpack.c.l.b16 %v2293
  %v2330 = vunpack.c.l.b16 %v2294
  %v2331 = vunpack.c.l.b16 %v2295
  %v2332 = vunpack.c.l.b16 %v2296
  %v2333 = vunpack.c.l.b16 %v2297
  %v2334 = vunpack.c.l.b16 %v2298
  %v2335 = vunpack.c.l.b16 %v2299
  %v2336 = vunpack.c.l.b16 %v2300
  %v2337 = vunpack.c.l.b16 %v2301
  %v2338 = vunpack.c.l.b16 %v2302
  %v2339 = vunpack.c.l.b16 %v2303
  %v2340 = vunpack.c.l.b16 %v2304
  %v2341 = vunpack.c.l.b16 %v2305
  %v2342 = vpack.c.b16 %v2327, %v2326
  %v2343 = vpack.c.b16 %v2329, %v2328
  %v2344 = vpack.c.b16 %v2331, %v2330
  %v2345 = vpack.c.b16 %v2333, %v2332
  %v2346 = vpack.c.b16 %v2335, %v2334
  %v2347 = vpack.c.b16 %v2337, %v2336
  %v2348 = vpack.c.b16 %v2339, %v2338
  %v2349 = vpack.c.b16 %v2341, %v2340
  %2358 = vmatprep.subr.bf16.mxu0 0
  %2359 = vmatpush1.bf16.msra.mxu0 %v2349
  %2360 = vmatprep.subr.bf16.mxu0 0
  %2361 = vmatpush1.bf16.msra.mxu0 %v2348
  %2362 = vmatprep.subr.bf16.mxu0 0
  %2363 = vmatpush1.bf16.msra.mxu0 %v2347
  %2364 = vmatprep.subr.bf16.mxu0 0
  %2365 = vmatpush1.bf16.msra.mxu0 %v2346
  %2366 = vmatprep.subr.bf16.mxu0 0
  %2367 = vmatpush1.bf16.msra.mxu0 %v2345
  %2368 = vmatprep.subr.bf16.mxu0 0
  %2369 = vmatpush1.bf16.msra.mxu0 %v2344
  %2370 = vmatprep.subr.bf16.mxu0 0
  %2371 = vmatpush1.bf16.msra.mxu0 %v2343
  %2372 = vmatprep.subr.bf16.mxu0 0
  %2373 = vmatpush1.bf16.msra.mxu0 %v2342
  %2374 = vmatprep.subr.bf16.mxu0 0
  %2375 = vmatpush2.bf16.msra.mxu0 0
  %2376 = vmatprep.subr.bf16.mxu0 0
  %2377 = vmatpush2.bf16.msra.mxu0 0
  %2378 = vmatprep.subr.bf16.mxu0 0
  %2379 = vmatpush2.bf16.msra.mxu0 0
  %2380 = vmatprep.subr.bf16.mxu0 0
  %2381 = vmatpush2.bf16.msra.mxu0 0
  %2382 = vmatprep.subr.bf16.mxu0 0
  %2383 = vmatpush2.bf16.msra.mxu0 0
  %2384 = vmatprep.subr.bf16.mxu0 0
  %2385 = vmatpush2.bf16.msra.mxu0 0
  %2386 = vmatprep.subr.bf16.mxu0 0
  %2387 = vmatpush2.bf16.msra.mxu0 0
  %2388 = vmatprep.subr.bf16.mxu0 0
  %2389 = vmatpush2.bf16.msra.mxu0 0
  %2390 = vmatprep.mubr.bf16.mxu0 0
  %2391 = vmatmul.mubr.bf16.gmra.mxu0 %v2288
  %v2392 = vpop.f32.mrf.mxu0
  %v2393 = vadd.f32 %v2309, %v2392
  %v2394 = vpop.f32.mrf.mxu0
  %v2395 = vpop.f32.mrf.mxu0
  %v2396 = vpop.f32.mrf.mxu0
  %2397 = vdwg.mxu0
  %v2398 = vadd.f32 %v2393, %v2174
  %v2399 = vpack.c.bf16 %v2398, %v2398
  %v2400 = vld [vmem:[%s4] sm:$0xf]
  %v2401 = vld [vmem:[%s4 + $0x4] sm:$0xf]
  %v2402 = vld [vmem:[%s4 + $0x8] sm:$0xf]
  %v2403 = vld [vmem:[%s4 + $0xc] sm:$0xf]
  %v2404 = vld [vmem:[%s4 + $0x10] sm:$0xf]
  %v2405 = vld [vmem:[%s4 + $0x14] sm:$0xf]
  %v2406 = vld [vmem:[%s4 + $0x18] sm:$0xf]
  %v2407 = vld [vmem:[%s4 + $0x1c] sm:$0xf]
  %v2408 = vld [vmem:[%s4 + $0x20] sm:$0xf]
  %v2409 = vld [vmem:[%s4 + $0x24] sm:$0xf]
  %v2410 = vld [vmem:[%s4 + $0x28] sm:$0xf]
  %v2411 = vld [vmem:[%s4 + $0x2c] sm:$0xf]
  %v2412 = vld [vmem:[%s4 + $0x30] sm:$0xf]
  %v2413 = vld [vmem:[%s4 + $0x34] sm:$0xf]
  %v2414 = vld [vmem:[%s4 + $0x38] sm:$0xf]
  %v2415 = vld [vmem:[%s4 + $0x3c] sm:$0xf]
  %v2416 = vlaneseq
  %v2417 = vshrl.u32 %v2416, 7
  %v2418 = vsub.s32 4, %v2417
  %v2419 = vrot.slane %v25, %v2418
  %v2436 = vunpack.c.l.b16 %v2400
  %v2437 = vunpack.c.l.b16 %v2401
  %v2438 = vunpack.c.l.b16 %v2402
  %v2439 = vunpack.c.l.b16 %v2403
  %v2440 = vunpack.c.l.b16 %v2404
  %v2441 = vunpack.c.l.b16 %v2405
  %v2442 = vunpack.c.l.b16 %v2406
  %v2443 = vunpack.c.l.b16 %v2407
  %v2444 = vunpack.c.l.b16 %v2408
  %v2445 = vunpack.c.l.b16 %v2409
  %v2446 = vunpack.c.l.b16 %v2410
  %v2447 = vunpack.c.l.b16 %v2411
  %v2448 = vunpack.c.l.b16 %v2412
  %v2449 = vunpack.c.l.b16 %v2413
  %v2450 = vunpack.c.l.b16 %v2414
  %v2451 = vunpack.c.l.b16 %v2415
  %v2452 = vpack.c.b16 %v2437, %v2436
  %v2453 = vpack.c.b16 %v2439, %v2438
  %v2454 = vpack.c.b16 %v2441, %v2440
  %v2455 = vpack.c.b16 %v2443, %v2442
  %v2456 = vpack.c.b16 %v2445, %v2444
  %v2457 = vpack.c.b16 %v2447, %v2446
  %v2458 = vpack.c.b16 %v2449, %v2448
  %v2459 = vpack.c.b16 %v2451, %v2450
  %2468 = vmatprep.subr.bf16.mxu0 0
  %2469 = vmatpush1.bf16.msra.mxu0 %v2459
  %2470 = vmatprep.subr.bf16.mxu0 0
  %2471 = vmatpush1.bf16.msra.mxu0 %v2458
  %2472 = vmatprep.subr.bf16.mxu0 0
  %2473 = vmatpush1.bf16.msra.mxu0 %v2457
  %2474 = vmatprep.subr.bf16.mxu0 0
  %2475 = vmatpush1.bf16.msra.mxu0 %v2456
  %2476 = vmatprep.subr.bf16.mxu0 0
  %2477 = vmatpush1.bf16.msra.mxu0 %v2455
  %2478 = vmatprep.subr.bf16.mxu0 0
  %2479 = vmatpush1.bf16.msra.mxu0 %v2454
  %2480 = vmatprep.subr.bf16.mxu0 0
  %2481 = vmatpush1.bf16.msra.mxu0 %v2453
  %2482 = vmatprep.subr.bf16.mxu0 0
  %2483 = vmatpush1.bf16.msra.mxu0 %v2452
  %2484 = vmatprep.subr.bf16.mxu0 0
  %2485 = vmatpush2.bf16.msra.mxu0 0
  %2486 = vmatprep.subr.bf16.mxu0 0
  %2487 = vmatpush2.bf16.msra.mxu0 0
  %2488 = vmatprep.subr.bf16.mxu0 0
  %2489 = vmatpush2.bf16.msra.mxu0 0
  %2490 = vmatprep.subr.bf16.mxu0 0
  %2491 = vmatpush2.bf16.msra.mxu0 0
  %2492 = vmatprep.subr.bf16.mxu0 0
  %2493 = vmatpush2.bf16.msra.mxu0 0
  %2494 = vmatprep.subr.bf16.mxu0 0
  %2495 = vmatpush2.bf16.msra.mxu0 0
  %2496 = vmatprep.subr.bf16.mxu0 0
  %2497 = vmatpush2.bf16.msra.mxu0 0
  %2498 = vmatprep.subr.bf16.mxu0 0
  %2499 = vmatpush2.bf16.msra.mxu0 0
  %2500 = vmatprep.mubr.bf16.mxu0 0
  %2501 = vmatmul.mubr.bf16.gmra.mxu0 %v2399
  %v2502 = vpop.f32.mrf.mxu0
  %v2503 = vadd.f32 %v2419, %v2502
  %v2504 = vpop.f32.mrf.mxu0
  %v2505 = vpop.f32.mrf.mxu0
  %v2506 = vpop.f32.mrf.mxu0
  %2507 = vdwg.mxu0
  %2508 = vst [vmem:[%s6] sm:$0x3] %v2503
  // Predicated region
  $region26: #{mapping_net_forward.1} parent=0 // pred_check
    _
  $region27: #{mapping_net_forward.1} parent=0 // pred_check_branch
    %2510 = sbr.rel (0) target = $region29
  $region28: #{mapping_net_forward.1} parent=0 // pred_region
    _
  $region29: #{mapping_net_forward.1} parent=0 // pred_fallthru
    _
  // Predicated region
  $region30: #{mapping_net_forward.1} parent=0 // pred_check
    _
  $region31: #{mapping_net_forward.1} parent=0 // pred_check_branch
    %2512 = sbr.rel (0) target = $region33
  $region32: #{mapping_net_forward.1} parent=0 // pred_region
    _
  $region33: #{mapping_net_forward.1} parent=0 // pred_fallthru
    _

</llo_original>
